<compile_context>
chip_gen: v5e
topology: v5e:2x2
jax: 0.10.0
libtpu: 0.0.40
codegen_flags: <defaults>
</compile_context>

<pallas_src>
import numpy as np
import jax
import jax.numpy as jnp
from jax import lax
from jax.experimental import pallas as pl
from jax.experimental.pallas import tpu as pltpu

# ---- model sizes (original CLIP: emb_dim=768; shrunk for the demo) ----------
EMB_DIM = 32          # config.emb_dim
HIDDEN = 300          # MLP hidden width from the module __init__
BSZ = 2               # batch size
NUM_CAPTIONS = 3      # captions per image
IMG_C, IMG_H, IMG_W = 3, 16, 16
IMG_FEAT = IMG_C * IMG_H * IMG_W          # 768, already a multiple of 128


def _round_up(x, m):
    return ((x + m - 1) // m) * m


# ---- lane/sublane-friendly padded sizes (zeros, sliced off in the wrapper) --
EMB_PAD = _round_up(EMB_DIM, 128)         # 128   (lane axis)
HIDDEN_PAD = _round_up(HIDDEN, 128)       # 384   (lane axis)
K1 = 3 * EMB_DIM                          # 96    (concat of sub|rel|obj)
K1_PAD = _round_up(K1, 128)               # 128   (lane axis)
CAP_PAD = _round_up(NUM_CAPTIONS, 8)      # 8     (SUBLANE axis -> pad to 8)


# -----------------------------------------------------------------------------
# Fused kernel: image projection + combine_embeddings MLP + logits_per_image
# -----------------------------------------------------------------------------
def _fused_forward_kernel(
    x_ref, wimg_ref,                       # image projection (bf16)
    sro_ref, w1_ref, w2_ref, w3_ref,       # MLP weights (bf16)
    bias_ref,                              # packed biases [8, HIDDEN_PAD] f32
    txt_ref, scale_ref,                    # text embeddings (f32) + exp(scale) SMEM
    logits_ref, com_ref,                   # outputs (f32)
):
    f32 = jnp.float32
    bf16 = jnp.bfloat16

    # packed f32 bias rows: 0 = img proj, 1 = mlp1, 2 = mlp2, 3 = mlp3
    b_img = bias_ref[0:1, :EMB_PAD]
    b1 = bias_ref[1:2, :]
    b2 = bias_ref[2:3, :]
    b3 = bias_ref[3:4, :EMB_PAD]

    # --- encode_image: linear projection stand-in (bf16 MXU, f32 acc) -------
    emb_img = (
        jnp.dot(x_ref[...], wimg_ref[...], preferred_element_type=f32) + b_img
    )                                                            # [B, EMB_PAD] f32

    # --- combine_embeddings: cat(sub,rel,obj) @ W1 as ONE K=128 matmul ------
    # bf16 only feeds the MXU; bias add / ReLU stay f32 (VPU).
    h1 = jnp.maximum(
        jnp.dot(sro_ref[...], w1_ref[...], preferred_element_type=f32) + b1,
        0.0,
    )
    h2 = jnp.maximum(
        jnp.dot(h1.astype(bf16), w2_ref[...], preferred_element_type=f32) + b2,
        0.0,
    )
    com_ref[...] = (
        jnp.dot(h2.astype(bf16), w3_ref[...], preferred_element_type=f32) + b3
    )                                                            # [n, EMB_PAD]

    # --- logits_per_image (all f32; no txt_n materialization, no array exp) --
    txt = txt_ref[...]                           # [B, CAP_PAD, EMB_PAD], pads = 0
    img_ss = jnp.sum(emb_img * emb_img, axis=-1, keepdims=True)
    img_n = emb_img * jnp.where(img_ss > 0.0, lax.rsqrt(img_ss), 0.0)

    dots = jnp.sum(txt * img_n[:, None, :], axis=-1)             # [B, CAP_PAD]
    txt_ss = jnp.sum(txt * txt, axis=-1)                         # [B, CAP_PAD]
    inv_txt = jnp.where(txt_ss > 0.0, lax.rsqrt(txt_ss), 0.0)    # guards pad rows
    logits_ref[...] = dots * inv_txt * scale_ref[0, 0]           # scalar SMEM scale


# -----------------------------------------------------------------------------
# Parameter preparation: stack W1 blocks, zero-pad to lane-friendly shapes and
# cast weights to bf16 ONCE.  Zero rows/cols are mathematically inert.
# -----------------------------------------------------------------------------
def _pad2(a, rows, cols):
    r, c = a.shape
    return jnp.pad(a, ((0, rows - r), (0, cols - c)))


def build_padded_params(mlp_params, img_proj):
    (w1s, w1r, w1o, b1, w2, b2, w3, b3) = mlp_params
    w_img, b_img = img_proj
    w1 = jnp.concatenate([w1s, w1r, w1o], axis=0)        # [3*EMB_DIM, HIDDEN]

    # Pack the four bias rows into one [8, HIDDEN_PAD] f32 buffer (one DMA).
    biases = jnp.zeros((8, HIDDEN_PAD), jnp.float32)
    biases = biases.at[0, :EMB_DIM].set(b_img[0])
    biases = biases.at[1, :HIDDEN].set(b1[0])
    biases = biases.at[2, :HIDDEN].set(b2[0])
    biases = biases.at[3, :EMB_DIM].set(b3[0])

    bf16 = jnp.bfloat16
    return (
        _pad2(w_img, IMG_FEAT, EMB_PAD).astype(bf16),
        _pad2(w1, K1_PAD, HIDDEN_PAD).astype(bf16),
        _pad2(w2, HIDDEN_PAD, HIDDEN_PAD).astype(bf16),
        _pad2(w3, HIDDEN_PAD, EMB_PAD).astype(bf16),
        biases,
    )


# -----------------------------------------------------------------------------
# Full forward (mirrors CompositionalCLIP.forward)
# -----------------------------------------------------------------------------
@jax.jit
def compositional_clip_forward(batch_images, emb_sub, emb_rel, emb_obj,
                               emb_txt, padded_params, logit_scale):
    # TODO(synk): the actual CLIP text/image transformer encoders are not
    # reproducible without the checkpoint; text embeddings are inputs and the
    # image encoder is a synthetic linear projection.
    (wimg_p, w1_p, w2_p, w3_p, biases_p) = padded_params
    bsz = batch_images.shape[0]
    n_rows = emb_sub.shape[0]
    num_cap = n_rows // bsz

    # Layout plumbing (cheap pads/reshapes/casts fused by XLA, no real compute):
    x_flat = batch_images.reshape(bsz, -1).astype(jnp.bfloat16)       # [B, 768]
    sro = jnp.concatenate([emb_sub, emb_rel, emb_obj], axis=-1)       # [n, 96]
    sro_p = jnp.pad(
        sro, ((0, 0), (0, K1_PAD - sro.shape[1]))).astype(jnp.bfloat16)
    txt3 = emb_txt.reshape(bsz, num_cap, EMB_DIM).astype(jnp.float32)
    txt_p = jnp.pad(
        txt3, ((0, 0), (0, CAP_PAD - num_cap), (0, EMB_PAD - EMB_DIM)))
    # exp(logit_scale) computed ONCE here; kernel only sees the scalar.
    scale = jnp.exp(logit_scale).astype(jnp.float32)                  # [1, 1]

    vmem = pl.BlockSpec(memory_space=pltpu.MemorySpace.VMEM)
    smem = pl.BlockSpec(memory_space=pltpu.MemorySpace.SMEM)

    logits_p, com_p = pl.pallas_call(
        _fused_forward_kernel,
        out_shape=(
            jax.ShapeDtypeStruct((bsz, CAP_PAD), jnp.float32),
            jax.ShapeDtypeStruct((n_rows, EMB_PAD), jnp.float32),
        ),
        in_specs=[vmem] * 8 + [smem],
        out_specs=(vmem, vmem),
    )(x_flat, wimg_p, sro_p, w1_p, w2_p, w3_p, biases_p, txt_p, scale)

    logits = logits_p[:, :num_cap]          # drop padded caption columns
    emb_com = com_p[:, :EMB_DIM]            # drop padded embedding columns
    return logits, emb_com, emb_txt


# -----------------------------------------------------------------------------
if __name__ == "__main__":
    key = jax.random.PRNGKey(0)
    ks = jax.random.split(key, 12)

    n_rows = BSZ * NUM_CAPTIONS

    # synthetic inputs (stand-ins for CLIP encoder outputs)
    batch_images = jax.random.normal(ks[0], (BSZ, IMG_C, IMG_H, IMG_W), jnp.float32)
    emb_sub = jax.random.normal(ks[1], (n_rows, EMB_DIM), jnp.float32)
    emb_rel = jax.random.normal(ks[2], (n_rows, EMB_DIM), jnp.float32)
    emb_obj = jax.random.normal(ks[3], (n_rows, EMB_DIM), jnp.float32)
    emb_txt = jax.random.normal(ks[4], (n_rows, EMB_DIM), jnp.float32)

    # deterministic parameters (shapes from the module __init__)
    s1 = 1.0 / np.sqrt(3 * EMB_DIM)
    s2 = 1.0 / np.sqrt(HIDDEN)
    w1s = s1 * jax.random.normal(ks[5], (EMB_DIM, HIDDEN), jnp.float32)
    w1r = s1 * jax.random.normal(ks[6], (EMB_DIM, HIDDEN), jnp.float32)
    w1o = s1 * jax.random.normal(ks[7], (EMB_DIM, HIDDEN), jnp.float32)
    b1 = jnp.zeros((1, HIDDEN), jnp.float32)
    w2 = s2 * jax.random.normal(ks[8], (HIDDEN, HIDDEN), jnp.float32)
    b2 = jnp.zeros((1, HIDDEN), jnp.float32)
    w3 = s2 * jax.random.normal(ks[9], (HIDDEN, EMB_DIM), jnp.float32)
    b3 = jnp.zeros((1, EMB_DIM), jnp.float32)
    mlp_params = (w1s, w1r, w1o, b1, w2, b2, w3, b3)

    w_img = (1.0 / np.sqrt(IMG_FEAT)) * jax.random.normal(
        ks[10], (IMG_FEAT, EMB_DIM), jnp.float32)
    b_img = jnp.zeros((1, EMB_DIM), jnp.float32)
    logit_scale = jnp.full((1, 1), np.log(1.0 / 0.07), jnp.float32)  # CLIP init

    padded_params = build_padded_params(mlp_params, (w_img, b_img))

    logits, emb_com, emb_txt_out = compositional_clip_forward(
        batch_images, emb_sub, emb_rel, emb_obj, emb_txt,
        padded_params, logit_scale)
    jax.block_until_ready((logits, emb_com, emb_txt_out))

    # ---- plain-JAX f32 reference check (un-padded math) ----
    x_flat = batch_images.reshape(BSZ, -1)
    emb_img_ref = x_flat @ w_img + b_img
    h1 = jnp.maximum(emb_sub @ w1s + emb_rel @ w1r + emb_obj @ w1o + b1, 0.0)
    h2 = jnp.maximum(h1 @ w2 + b2, 0.0)
    emb_com_ref = h2 @ w3 + b3
    txt_n = emb_txt / jnp.linalg.norm(emb_txt, axis=-1, keepdims=True)
    img_n = emb_img_ref / jnp.linalg.norm(emb_img_ref, axis=-1, keepdims=True)
    txt3 = txt_n.reshape(BSZ, NUM_CAPTIONS, EMB_DIM)
    logits_ref = jnp.exp(logit_scale[0, 0]) * jnp.einsum("bce,be->bc", txt3, img_n)

    assert logits.shape == (BSZ, NUM_CAPTIONS)
    assert emb_com.shape == (n_rows, EMB_DIM)
    # bf16 MXU inputs with f32 accumulation: slightly looser atol on emb_com
    # than the pure-f32 path; logits are large (x14.3 scale) so rtol dominates.
    np.testing.assert_allclose(np.asarray(emb_com), np.asarray(emb_com_ref),
                               rtol=2e-2, atol=3e-2)
    np.testing.assert_allclose(np.asarray(logits), np.asarray(logits_ref),
                               rtol=2e-2, atol=2e-2)
    np.testing.assert_allclose(np.asarray(emb_txt_out), np.asarray(emb_txt))

    print("KERNEL_OK")
</pallas_src>

<mosaic_0001>
module attributes {stable_mosaic.version = 11 : i64} {
  func.func @_fused_forward_kernel(%arg0: memref<2x768xbf16, #tpu.memory_space<vmem>>, %arg1: memref<768x128xbf16, #tpu.memory_space<vmem>>, %arg2: memref<6x128xbf16, #tpu.memory_space<vmem>>, %arg3: memref<128x384xbf16, #tpu.memory_space<vmem>>, %arg4: memref<384x384xbf16, #tpu.memory_space<vmem>>, %arg5: memref<384x128xbf16, #tpu.memory_space<vmem>>, %arg6: memref<8x384xf32, #tpu.memory_space<vmem>>, %arg7: memref<2x8x128xf32, #tpu.memory_space<vmem>>, %arg8: memref<1x1xf32, #tpu.memory_space<smem>>, %arg9: memref<2x8xf32, #tpu.memory_space<vmem>>, %arg10: memref<6x128xf32, #tpu.memory_space<vmem>>) attributes {dimension_semantics = [], scalar_prefetch = 0 : i64, scratch_operands = 0 : i64, tpu.core_type = #tpu.core_type<tc>} {
    %c0 = arith.constant 0 : index
    %c0_0 = arith.constant 0 : index
    %0 = vector.load %arg6[%c0, %c0_0] : memref<8x384xf32, #tpu.memory_space<vmem>>, vector<1x128xf32>
    %c1 = arith.constant 1 : index
    %c0_1 = arith.constant 0 : index
    %1 = vector.load %arg6[%c1, %c0_1] : memref<8x384xf32, #tpu.memory_space<vmem>>, vector<1x384xf32>
    %c2 = arith.constant 2 : index
    %c0_2 = arith.constant 0 : index
    %2 = vector.load %arg6[%c2, %c0_2] : memref<8x384xf32, #tpu.memory_space<vmem>>, vector<1x384xf32>
    %c3 = arith.constant 3 : index
    %c0_3 = arith.constant 0 : index
    %3 = vector.load %arg6[%c3, %c0_3] : memref<8x384xf32, #tpu.memory_space<vmem>>, vector<1x128xf32>
    %c0_4 = arith.constant 0 : index
    %c0_5 = arith.constant 0 : index
    %4 = vector.load %arg0[%c0_4, %c0_5] : memref<2x768xbf16, #tpu.memory_space<vmem>>, vector<2x768xbf16>
    %c0_6 = arith.constant 0 : index
    %c0_7 = arith.constant 0 : index
    %5 = vector.load %arg1[%c0_6, %c0_7] : memref<768x128xbf16, #tpu.memory_space<vmem>>, vector<768x128xbf16>
    %cst = arith.constant dense<0.000000e+00> : vector<2x128xf32>
    %6 = tpu.matmul %4, %5, %cst {dimension_numbers = #tpu.dot_dimension_numbers<[1], [0], [0], [1], [0, 0, 1, 1], [], []>} : vector<2x768xbf16>, vector<768x128xbf16>, vector<2x128xf32> -> vector<2x128xf32>
    %7 = vector.broadcast %0 : vector<1x128xf32> to vector<2x128xf32>
    %8 = arith.addf %6, %7 : vector<2x128xf32>
    %c0_8 = arith.constant 0 : index
    %c0_9 = arith.constant 0 : index
    %9 = vector.load %arg2[%c0_8, %c0_9] : memref<6x128xbf16, #tpu.memory_space<vmem>>, vector<6x128xbf16>
    %c0_10 = arith.constant 0 : index
    %c0_11 = arith.constant 0 : index
    %10 = vector.load %arg3[%c0_10, %c0_11] : memref<128x384xbf16, #tpu.memory_space<vmem>>, vector<128x384xbf16>
    %cst_12 = arith.constant dense<0.000000e+00> : vector<6x384xf32>
    %11 = tpu.matmul %9, %10, %cst_12 {dimension_numbers = #tpu.dot_dimension_numbers<[1], [0], [0], [1], [0, 0, 1, 1], [], []>} : vector<6x128xbf16>, vector<128x384xbf16>, vector<6x384xf32> -> vector<6x384xf32>
    %12 = vector.broadcast %1 : vector<1x384xf32> to vector<6x384xf32>
    %13 = arith.addf %11, %12 : vector<6x384xf32>
    %cst_13 = arith.constant 0.000000e+00 : f32
    %14 = vector.broadcast %cst_13 : f32 to vector<6x384xf32>
    %15 = arith.maximumf %13, %14 : vector<6x384xf32>
    %16 = arith.truncf %15 : vector<6x384xf32> to vector<6x384xbf16>
    %c0_14 = arith.constant 0 : index
    %c0_15 = arith.constant 0 : index
    %17 = vector.load %arg4[%c0_14, %c0_15] : memref<384x384xbf16, #tpu.memory_space<vmem>>, vector<384x384xbf16>
    %cst_16 = arith.constant dense<0.000000e+00> : vector<6x384xf32>
    %18 = tpu.matmul %16, %17, %cst_16 {dimension_numbers = #tpu.dot_dimension_numbers<[1], [0], [0], [1], [0, 0, 1, 1], [], []>} : vector<6x384xbf16>, vector<384x384xbf16>, vector<6x384xf32> -> vector<6x384xf32>
    %19 = vector.broadcast %2 : vector<1x384xf32> to vector<6x384xf32>
    %20 = arith.addf %18, %19 : vector<6x384xf32>
    %cst_17 = arith.constant 0.000000e+00 : f32
    %21 = vector.broadcast %cst_17 : f32 to vector<6x384xf32>
    %22 = arith.maximumf %20, %21 : vector<6x384xf32>
    %23 = arith.truncf %22 : vector<6x384xf32> to vector<6x384xbf16>
    %c0_18 = arith.constant 0 : index
    %c0_19 = arith.constant 0 : index
    %24 = vector.load %arg5[%c0_18, %c0_19] : memref<384x128xbf16, #tpu.memory_space<vmem>>, vector<384x128xbf16>
    %cst_20 = arith.constant dense<0.000000e+00> : vector<6x128xf32>
    %25 = tpu.matmul %23, %24, %cst_20 {dimension_numbers = #tpu.dot_dimension_numbers<[1], [0], [0], [1], [0, 0, 1, 1], [], []>} : vector<6x384xbf16>, vector<384x128xbf16>, vector<6x128xf32> -> vector<6x128xf32>
    %26 = vector.broadcast %3 : vector<1x128xf32> to vector<6x128xf32>
    %27 = arith.addf %25, %26 : vector<6x128xf32>
    %c0_21 = arith.constant 0 : index
    %c0_22 = arith.constant 0 : index
    %28 = vector.load %arg10[%c0_21, %c0_22] : memref<6x128xf32, #tpu.memory_space<vmem>>, vector<6x128xf32>
    tpu.vector_store %arg10[%c0_21, %c0_22], %27 {strides = array<i32>} : memref<6x128xf32, #tpu.memory_space<vmem>>, vector<6x128xf32>,
    %c0_23 = arith.constant 0 : index
    %c0_24 = arith.constant 0 : index
    %c0_25 = arith.constant 0 : index
    %29 = vector.load %arg7[%c0_23, %c0_24, %c0_25] : memref<2x8x128xf32, #tpu.memory_space<vmem>>, vector<2x8x128xf32>
    %30 = arith.mulf %8, %8 : vector<2x128xf32>
    %cst_26 = arith.constant dense<0.000000e+00> : vector<2xf32>
    %31 = vector.multi_reduction <add>, %30, %cst_26 [1] : vector<2x128xf32> to vector<2xf32>
    %32 = vector.shape_cast %31 : vector<2xf32> to vector<2x1xf32>
    %cst_27 = arith.constant 0.000000e+00 : f32
    %33 = vector.broadcast %cst_27 : f32 to vector<2x1xf32>
    %34 = arith.cmpf ogt, %32, %33 : vector<2x1xf32>
    %35 = math.rsqrt %32 : vector<2x1xf32>
    %cst_28 = arith.constant 0.000000e+00 : f32
    %36 = vector.broadcast %cst_28 : f32 to vector<2x1xf32>
    %37 = arith.select %34, %35, %36 : vector<2x1xi1>, vector<2x1xf32>
    %38 = vector.broadcast %37 : vector<2x1xf32> to vector<2x128xf32>
    %39 = arith.mulf %8, %38 : vector<2x128xf32>
    %40 = vector.shape_cast %39 : vector<2x128xf32> to vector<2x1x128xf32>
    %41 = vector.broadcast %40 : vector<2x1x128xf32> to vector<2x8x128xf32>
    %42 = arith.mulf %29, %41 : vector<2x8x128xf32>
    %cst_29 = arith.constant dense<0.000000e+00> : vector<2x8xf32>
    %43 = vector.multi_reduction <add>, %42, %cst_29 [2] : vector<2x8x128xf32> to vector<2x8xf32>
    %44 = arith.mulf %29, %29 : vector<2x8x128xf32>
    %cst_30 = arith.constant dense<0.000000e+00> : vector<2x8xf32>
    %45 = vector.multi_reduction <add>, %44, %cst_30 [2] : vector<2x8x128xf32> to vector<2x8xf32>
    %cst_31 = arith.constant 0.000000e+00 : f32
    %46 = vector.broadcast %cst_31 : f32 to vector<2x8xf32>
    %47 = arith.cmpf ogt, %45, %46 : vector<2x8xf32>
    %48 = math.rsqrt %45 : vector<2x8xf32>
    %cst_32 = arith.constant 0.000000e+00 : f32
    %49 = vector.broadcast %cst_32 : f32 to vector<2x8xf32>
    %50 = arith.select %47, %48, %49 : vector<2x8xi1>, vector<2x8xf32>
    %51 = arith.mulf %43, %50 : vector<2x8xf32>
    %c0_33 = arith.constant 0 : index
    %c0_34 = arith.constant 0 : index
    %52 = memref.load %arg8[%c0_33, %c0_34] : memref<1x1xf32, #tpu.memory_space<smem>>
    %53 = vector.broadcast %52 : f32 to vector<2x8xf32>
    %54 = arith.mulf %51, %53 : vector<2x8xf32>
    %c0_35 = arith.constant 0 : index
    %c0_36 = arith.constant 0 : index
    %55 = vector.load %arg9[%c0_35, %c0_36] : memref<2x8xf32, #tpu.memory_space<vmem>>, vector<2x8xf32>
    tpu.vector_store %arg9[%c0_35, %c0_36], %54 {strides = array<i32>} : memref<2x8xf32, #tpu.memory_space<vmem>>, vector<2x8xf32>,
    return
  }
}

</mosaic_0001>

<llo_original>
// kernel: compositional_clip_forward.1
$region0: #{compositional_clip_forward.1}
  #allocation0 [shape = 'u32[]', space=smem, size = 0x4, offset = 0x4, fixed_abs, tag = 'smem constant byte address 0x4 - core index']
  #allocation1 [shape = 'u32[72,128]{1,0:T(1,128)}', space=vmem, size = 0x9000, scoped, tag = 'internal scratch']
  #allocation2 [shape = 'f32[1,1]{1,0:T(1,128)S(6)}', space=smem, size = 0x200, scoped, tag = 'scoped memory for compositional_clip_forward.1']
  %s0 = inlined_call_operand.vmem [shape: bf16[2,768], index: 0, kind: input, shape index: {}]
  %s1 = inlined_call_operand.hbm [shape: bf16[768,128], index: 1, kind: input, shape index: {}]
  %s2 = inlined_call_operand.vmem [shape: bf16[6,128], index: 2, kind: input, shape index: {}]
  %s3 = inlined_call_operand.vmem [shape: bf16[128,384], index: 3, kind: input, shape index: {}]
  %s4 = inlined_call_operand.hbm [shape: bf16[384,384], index: 4, kind: input, shape index: {}]
  %s5 = inlined_call_operand.hbm [shape: bf16[384,128], index: 5, kind: input, shape index: {}]
  %s6 = inlined_call_operand.vmem [shape: f32[8,384], index: 6, kind: input, shape index: {}]
  %s7 = inlined_call_operand.vmem [shape: f32[2,8,128], index: 7, kind: input, shape index: {}]
  %s8 = inlined_call_operand.<no memory space> [shape: f32[1,1], index: 8, kind: input, shape index: {}]
  %s9 = inlined_call_operand.hbm [shape: f32[2,8], index: 9, kind: output, shape index: {0}]
  %s10 = inlined_call_operand.hbm [shape: f32[6,128], index: 10, kind: output, shape index: {1}]
  %11 = xla_tuple %s9, %s10
  %s12 = sld [smem:[#allocation0]]
  $region66: #{compositional_clip_forward.1} parent=0
    _
  %s14 = ssub.s32 1, %s12
  %s15 = scalar_select 0, %s14, %s12
  %16 = sst [smem:[#allocation2]] %s8
  $region1: #{compositional_clip_forward.1} parent=0
    #allocation3 [shape = 'u8[196608]{0}', space=vmem, size = 0x30000, scoped, tag = 'input window, operand 1, single buffered']
    #allocation4 [shape = 's32[1]{0}', space=sflag, size = 0x4, scoped, tag = 'scoped memory for compositional_clip_forward.1']
    #allocation5 [shape = 's32[1]{0}', space=sflag, size = 0x4, scoped, tag = 'scoped memory for compositional_clip_forward.1']
    #allocation6 [shape = 'u8[294912]{0}', space=vmem, size = 0x48000, scoped, tag = 'input window, operand 4, single buffered']
    #allocation7 [shape = 's32[1]{0}', space=sflag, size = 0x4, scoped, tag = 'scoped memory for compositional_clip_forward.1']
    #allocation8 [shape = 'u8[98304]{0}', space=vmem, size = 0x18000, scoped, tag = 'input window, operand 5, single buffered']
    #allocation9 [shape = 'u8[1024]{0}', space=vmem, size = 0x400, scoped, tag = 'output window, operand 0, single buffered']
    #allocation10 [shape = 'u8[4096]{0}', space=vmem, size = 0x1000, scoped, tag = 'output window, operand 1, single buffered']
    #allocation11 [shape = 's32[1]{0}', space=sflag, size = 0x4, scoped, tag = 'scoped memory for compositional_clip_forward.1']
    %17 = vsyncpa [#allocation4], 0
    %18 = vsyncpa [#allocation7], 0
    %19 = vsyncpa [#allocation5], 0
    %20 = vsyncpa [#allocation11], 0
    // Predicated region
    $region2: #{compositional_clip_forward.1} parent=1 // pred_check
      _
    $region3: #{compositional_clip_forward.1} parent=1 // pred_check_branch
      %22 = sbr.rel (0) target = $region5
    $region4: #{compositional_clip_forward.1} parent=1 // pred_region
      _
    $region5: #{compositional_clip_forward.1} parent=1 // pred_fallthru
      _
    // Predicated region
    $region6: #{compositional_clip_forward.1} parent=1 // pred_check
      _
    $region7: #{compositional_clip_forward.1} parent=1 // pred_check_branch
      %24 = sbr.rel (0) target = $region9
    $region8: #{compositional_clip_forward.1} parent=1 // pred_region
      %26 = vsyncadd [#allocation4], 0
      %s27 = sshll.u32 %s1, 4
      %s28 = int_to_ptr.hbm [resolvable:$true] %s27
      %s29 = sshll.u32 [#allocation3], 4
      %s30 = int_to_ptr.vmem [resolvable:$true] %s29
      %35 = dma.hbm_to_vmem [thread:$0]  %s28, 6144, %s30, [#allocation4], 64, 64, 4
    $region9: #{compositional_clip_forward.1} parent=1 // pred_fallthru
      _
    // Predicated region
    $region10: #{compositional_clip_forward.1} parent=1 // pred_check
      _
    $region11: #{compositional_clip_forward.1} parent=1 // pred_check_branch
      %37 = sbr.rel (0) target = $region13
    $region12: #{compositional_clip_forward.1} parent=1 // pred_region
      _
    $region13: #{compositional_clip_forward.1} parent=1 // pred_fallthru
      _
    // Predicated region
    $region14: #{compositional_clip_forward.1} parent=1 // pred_check
      _
    $region15: #{compositional_clip_forward.1} parent=1 // pred_check_branch
      %39 = sbr.rel (0) target = $region17
    $region16: #{compositional_clip_forward.1} parent=1 // pred_region
      _
    $region17: #{compositional_clip_forward.1} parent=1 // pred_fallthru
      _
    // Predicated region
    $region18: #{compositional_clip_forward.1} parent=1 // pred_check
      _
    $region19: #{compositional_clip_forward.1} parent=1 // pred_check_branch
      %41 = sbr.rel (0) target = $region21
    $region20: #{compositional_clip_forward.1} parent=1 // pred_region
      %43 = vsyncadd [#allocation7], 0
      %s44 = sshll.u32 %s4, 4
      %s45 = int_to_ptr.hbm [resolvable:$true] %s44
      %s46 = sshll.u32 [#allocation6], 4
      %s47 = int_to_ptr.vmem [resolvable:$true] %s46
      %52 = dma.hbm_to_vmem [thread:$0]  %s45, 9216, %s47, [#allocation7], 192, 192, 12
    $region21: #{compositional_clip_forward.1} parent=1 // pred_fallthru
      _
    // Predicated region
    $region22: #{compositional_clip_forward.1} parent=1 // pred_check
      _
    $region23: #{compositional_clip_forward.1} parent=1 // pred_check_branch
      %54 = sbr.rel (0) target = $region25
    $region24: #{compositional_clip_forward.1} parent=1 // pred_region
      %56 = vsyncadd [#allocation7], 0
      %s57 = sshll.u32 %s5, 4
      %s58 = int_to_ptr.hbm [resolvable:$true] %s57
      %s59 = sshll.u32 [#allocation8], 4
      %s60 = int_to_ptr.vmem [resolvable:$true] %s59
      %65 = dma.hbm_to_vmem [thread:$0]  %s58, 3072, %s60, [#allocation7], 64, 64, 4
    $region25: #{compositional_clip_forward.1} parent=1 // pred_fallthru
      _
    // Predicated region
    $region26: #{compositional_clip_forward.1} parent=1 // pred_check
      _
    $region27: #{compositional_clip_forward.1} parent=1 // pred_check_branch
      %67 = sbr.rel (0) target = $region29
    $region28: #{compositional_clip_forward.1} parent=1 // pred_region
      _
    $region29: #{compositional_clip_forward.1} parent=1 // pred_fallthru
      _
    // Predicated region
    $region30: #{compositional_clip_forward.1} parent=1 // pred_check
      _
    $region31: #{compositional_clip_forward.1} parent=1 // pred_check_branch
      %69 = sbr.rel (0) target = $region33
    $region32: #{compositional_clip_forward.1} parent=1 // pred_region
      _
    $region33: #{compositional_clip_forward.1} parent=1 // pred_fallthru
      _
    // Predicated region
    $region34: #{compositional_clip_forward.1} parent=1 // pred_check
      _
    $region35: #{compositional_clip_forward.1} parent=1 // pred_check_branch
      %71 = sbr.rel (0) target = $region37
    $region36: #{compositional_clip_forward.1} parent=1 // pred_region
      _
    $region37: #{compositional_clip_forward.1} parent=1 // pred_fallthru
      _
    // Predicated region
    $region38: #{compositional_clip_forward.1} parent=1 // pred_check
      _
    $region39: #{compositional_clip_forward.1} parent=1 // pred_check_branch
      %73 = sbr.rel (0) target = $region41
    $region40: #{compositional_clip_forward.1} parent=1 // pred_region
      %75 = dma.done [#allocation4], 6144
    $region41: #{compositional_clip_forward.1} parent=1 // pred_fallthru
      _
    // Predicated region
    $region42: #{compositional_clip_forward.1} parent=1 // pred_check
      _
    $region43: #{compositional_clip_forward.1} parent=1 // pred_check_branch
      %77 = sbr.rel (0) target = $region45
    $region44: #{compositional_clip_forward.1} parent=1 // pred_region
      %79 = dma.done [#allocation7], 9216
    $region45: #{compositional_clip_forward.1} parent=1 // pred_fallthru
      _
    // Predicated region
    $region46: #{compositional_clip_forward.1} parent=1 // pred_check
      _
    $region47: #{compositional_clip_forward.1} parent=1 // pred_check_branch
      %81 = sbr.rel (0) target = $region49
    $region48: #{compositional_clip_forward.1} parent=1 // pred_region
      %83 = dma.done [#allocation7], 3072
    $region49: #{compositional_clip_forward.1} parent=1 // pred_fallthru
      _
    %v84 = vld [vmem:[%s6] ss:$0 sm:$0xff]
    %s85 = scalar_lea.vmem %s6, 1
    %v86 = vld [vmem:[%s85] ss:$8 sm:$0x7]
    %s87 = scalar_lea.vmem %s6, 2
    %v88 = vld [vmem:[%s87] ss:$8 sm:$0x7]
    %v89 = vld [vmem:[%s6 + $0x3] ss:$0 sm:$0xff]
    %v90 = vld [vmem:[%s0] sm:$0x3f]
    %v91 = vld [vmem:[#allocation3] sm:$0xf]
    %v92 = vld [vmem:[#allocation3 + $0x4] sm:$0xf]
    %v93 = vld [vmem:[#allocation3 + $0x8] sm:$0xf]
    %v94 = vld [vmem:[#allocation3 + $0xc] sm:$0xf]
    %v95 = vld [vmem:[#allocation3 + $0x10] sm:$0xf]
    %v96 = vld [vmem:[#allocation3 + $0x14] sm:$0xf]
    %v97 = vld [vmem:[#allocation3 + $0x18] sm:$0xf]
    %v98 = vld [vmem:[#allocation3 + $0x1c] sm:$0xf]
    %v99 = vld [vmem:[#allocation3 + $0x20] sm:$0xf]
    %v100 = vld [vmem:[#allocation3 + $0x24] sm:$0xf]
    %v101 = vld [vmem:[#allocation3 + $0x28] sm:$0xf]
    %v102 = vld [vmem:[#allocation3 + $0x2c] sm:$0xf]
    %v103 = vld [vmem:[#allocation3 + $0x30] sm:$0xf]
    %v104 = vld [vmem:[#allocation3 + $0x34] sm:$0xf]
    %v105 = vld [vmem:[#allocation3 + $0x38] sm:$0xf]
    %v106 = vld [vmem:[#allocation3 + $0x3c] sm:$0xf]
    %v107 = vld [vmem:[#allocation3 + $0x40] sm:$0xf]
    %v108 = vld [vmem:[#allocation3 + $0x44] sm:$0xf]
    %v109 = vld [vmem:[#allocation3 + $0x48] sm:$0xf]
    %v110 = vld [vmem:[#allocation3 + $0x4c] sm:$0xf]
    %v111 = vld [vmem:[#allocation3 + $0x50] sm:$0xf]
    %v112 = vld [vmem:[#allocation3 + $0x54] sm:$0xf]
    %v113 = vld [vmem:[#allocation3 + $0x58] sm:$0xf]
    %v114 = vld [vmem:[#allocation3 + $0x5c] sm:$0xf]
    %v115 = vld [vmem:[#allocation3 + $0x60] sm:$0xf]
    %v116 = vld [vmem:[#allocation3 + $0x64] sm:$0xf]
    %v117 = vld [vmem:[#allocation3 + $0x68] sm:$0xf]
    %v118 = vld [vmem:[#allocation3 + $0x6c] sm:$0xf]
    %v119 = vld [vmem:[#allocation3 + $0x70] sm:$0xf]
    %v120 = vld [vmem:[#allocation3 + $0x74] sm:$0xf]
    %v121 = vld [vmem:[#allocation3 + $0x78] sm:$0xf]
    %v122 = vld [vmem:[#allocation3 + $0x7c] sm:$0xf]
    %v123 = vld [vmem:[#allocation3 + $0x80] sm:$0xf]
    %v124 = vld [vmem:[#allocation3 + $0x84] sm:$0xf]
    %v125 = vld [vmem:[#allocation3 + $0x88] sm:$0xf]
    %v126 = vld [vmem:[#allocation3 + $0x8c] sm:$0xf]
    %v127 = vld [vmem:[#allocation3 + $0x90] sm:$0xf]
    %v128 = vld [vmem:[#allocation3 + $0x94] sm:$0xf]
    %v129 = vld [vmem:[#allocation3 + $0x98] sm:$0xf]
    %v130 = vld [vmem:[#allocation3 + $0x9c] sm:$0xf]
    %v131 = vld [vmem:[#allocation3 + $0xa0] sm:$0xf]
    %v132 = vld [vmem:[#allocation3 + $0xa4] sm:$0xf]
    %v133 = vld [vmem:[#allocation3 + $0xa8] sm:$0xf]
    %v134 = vld [vmem:[#allocation3 + $0xac] sm:$0xf]
    %v135 = vld [vmem:[#allocation3 + $0xb0] sm:$0xf]
    %v136 = vld [vmem:[#allocation3 + $0xb4] sm:$0xf]
    %v137 = vld [vmem:[#allocation3 + $0xb8] sm:$0xf]
    %v138 = vld [vmem:[#allocation3 + $0xbc] sm:$0xf]
    %v139 = vld [vmem:[#allocation3 + $0xc0] sm:$0xf]
    %v140 = vld [vmem:[#allocation3 + $0xc4] sm:$0xf]
    %v141 = vld [vmem:[#allocation3 + $0xc8] sm:$0xf]
    %v142 = vld [vmem:[#allocation3 + $0xcc] sm:$0xf]
    %v143 = vld [vmem:[#allocation3 + $0xd0] sm:$0xf]
    %v144 = vld [vmem:[#allocation3 + $0xd4] sm:$0xf]
    %v145 = vld [vmem:[#allocation3 + $0xd8] sm:$0xf]
    %v146 = vld [vmem:[#allocation3 + $0xdc] sm:$0xf]
    %v147 = vld [vmem:[#allocation3 + $0xe0] sm:$0xf]
    %v148 = vld [vmem:[#allocation3 + $0xe4] sm:$0xf]
    %v149 = vld [vmem:[#allocation3 + $0xe8] sm:$0xf]
    %v150 = vld [vmem:[#allocation3 + $0xec] sm:$0xf]
    %v151 = vld [vmem:[#allocation3 + $0xf0] sm:$0xf]
    %v152 = vld [vmem:[#allocation3 + $0xf4] sm:$0xf]
    %v153 = vld [vmem:[#allocation3 + $0xf8] sm:$0xf]
    %v154 = vld [vmem:[#allocation3 + $0xfc] sm:$0xf]
    %v155 = vld [vmem:[#allocation3 + $0x100] sm:$0xf]
    %v156 = vld [vmem:[#allocation3 + $0x104] sm:$0xf]
    %v157 = vld [vmem:[#allocation3 + $0x108] sm:$0xf]
    %v158 = vld [vmem:[#allocation3 + $0x10c] sm:$0xf]
    %v159 = vld [vmem:[#allocation3 + $0x110] sm:$0xf]
    %v160 = vld [vmem:[#allocation3 + $0x114] sm:$0xf]
    %v161 = vld [vmem:[#allocation3 + $0x118] sm:$0xf]
    %v162 = vld [vmem:[#allocation3 + $0x11c] sm:$0xf]
    %v163 = vld [vmem:[#allocation3 + $0x120] sm:$0xf]
    %v164 = vld [vmem:[#allocation3 + $0x124] sm:$0xf]
    %v165 = vld [vmem:[#allocation3 + $0x128] sm:$0xf]
    %v166 = vld [vmem:[#allocation3 + $0x12c] sm:$0xf]
    %v167 = vld [vmem:[#allocation3 + $0x130] sm:$0xf]
    %v168 = vld [vmem:[#allocation3 + $0x134] sm:$0xf]
    %v169 = vld [vmem:[#allocation3 + $0x138] sm:$0xf]
    %v170 = vld [vmem:[#allocation3 + $0x13c] sm:$0xf]
    %v171 = vld [vmem:[#allocation3 + $0x140] sm:$0xf]
    %v172 = vld [vmem:[#allocation3 + $0x144] sm:$0xf]
    %v173 = vld [vmem:[#allocation3 + $0x148] sm:$0xf]
    %v174 = vld [vmem:[#allocation3 + $0x14c] sm:$0xf]
    %v175 = vld [vmem:[#allocation3 + $0x150] sm:$0xf]
    %v176 = vld [vmem:[#allocation3 + $0x154] sm:$0xf]
    %v177 = vld [vmem:[#allocation3 + $0x158] sm:$0xf]
    %v178 = vld [vmem:[#allocation3 + $0x15c] sm:$0xf]
    %v179 = vld [vmem:[#allocation3 + $0x160] sm:$0xf]
    %v180 = vld [vmem:[#allocation3 + $0x164] sm:$0xf]
    %v181 = vld [vmem:[#allocation3 + $0x168] sm:$0xf]
    %v182 = vld [vmem:[#allocation3 + $0x16c] sm:$0xf]
    %v183 = vld [vmem:[#allocation3 + $0x170] sm:$0xf]
    %v184 = vld [vmem:[#allocation3 + $0x174] sm:$0xf]
    %v185 = vld [vmem:[#allocation3 + $0x178] sm:$0xf]
    %v186 = vld [vmem:[#allocation3 + $0x17c] sm:$0xf]
    %188 = vst [vmem:[#allocation1] ss:$9 sm:$0xff] %v90
    %v189 = vld [vmem:[#allocation1] sm:$0xff]
    %v190 = vld [vmem:[#allocation1 + $0x9] sm:$0xff]
    %v191 = vld [vmem:[#allocation1 + $0x12] sm:$0xff]
    %v192 = vld [vmem:[#allocation1 + $0x1b] sm:$0xff]
    %v193 = vld [vmem:[#allocation1 + $0x24] sm:$0xff]
    %v194 = vld [vmem:[#allocation1 + $0x2d] sm:$0xff]
    %v297 = vunpack.c.l.b16 %v91
    %v298 = vunpack.c.l.b16 %v92
    %v299 = vunpack.c.l.b16 %v93
    %v300 = vunpack.c.l.b16 %v94
    %v301 = vunpack.c.l.b16 %v95
    %v302 = vunpack.c.l.b16 %v96
    %v303 = vunpack.c.l.b16 %v97
    %v304 = vunpack.c.l.b16 %v98
    %v305 = vunpack.c.l.b16 %v99
    %v306 = vunpack.c.l.b16 %v100
    %v307 = vunpack.c.l.b16 %v101
    %v308 = vunpack.c.l.b16 %v102
    %v309 = vunpack.c.l.b16 %v103
    %v310 = vunpack.c.l.b16 %v104
    %v311 = vunpack.c.l.b16 %v105
    %v312 = vunpack.c.l.b16 %v106
    %v313 = vunpack.c.l.b16 %v107
    %v314 = vunpack.c.l.b16 %v108
    %v315 = vunpack.c.l.b16 %v109
    %v316 = vunpack.c.l.b16 %v110
    %v317 = vunpack.c.l.b16 %v111
    %v318 = vunpack.c.l.b16 %v112
    %v319 = vunpack.c.l.b16 %v113
    %v320 = vunpack.c.l.b16 %v114
    %v321 = vunpack.c.l.b16 %v115
    %v322 = vunpack.c.l.b16 %v116
    %v323 = vunpack.c.l.b16 %v117
    %v324 = vunpack.c.l.b16 %v118
    %v325 = vunpack.c.l.b16 %v119
    %v326 = vunpack.c.l.b16 %v120
    %v327 = vunpack.c.l.b16 %v121
    %v328 = vunpack.c.l.b16 %v122
    %v329 = vunpack.c.l.b16 %v123
    %v330 = vunpack.c.l.b16 %v124
    %v331 = vunpack.c.l.b16 %v125
    %v332 = vunpack.c.l.b16 %v126
    %v333 = vunpack.c.l.b16 %v127
    %v334 = vunpack.c.l.b16 %v128
    %v335 = vunpack.c.l.b16 %v129
    %v336 = vunpack.c.l.b16 %v130
    %v337 = vunpack.c.l.b16 %v131
    %v338 = vunpack.c.l.b16 %v132
    %v339 = vunpack.c.l.b16 %v133
    %v340 = vunpack.c.l.b16 %v134
    %v341 = vunpack.c.l.b16 %v135
    %v342 = vunpack.c.l.b16 %v136
    %v343 = vunpack.c.l.b16 %v137
    %v344 = vunpack.c.l.b16 %v138
    %v345 = vunpack.c.l.b16 %v139
    %v346 = vunpack.c.l.b16 %v140
    %v347 = vunpack.c.l.b16 %v141
    %v348 = vunpack.c.l.b16 %v142
    %v349 = vunpack.c.l.b16 %v143
    %v350 = vunpack.c.l.b16 %v144
    %v351 = vunpack.c.l.b16 %v145
    %v352 = vunpack.c.l.b16 %v146
    %v353 = vunpack.c.l.b16 %v147
    %v354 = vunpack.c.l.b16 %v148
    %v355 = vunpack.c.l.b16 %v149
    %v356 = vunpack.c.l.b16 %v150
    %v357 = vunpack.c.l.b16 %v151
    %v358 = vunpack.c.l.b16 %v152
    %v359 = vunpack.c.l.b16 %v153
    %v360 = vunpack.c.l.b16 %v154
    %v361 = vunpack.c.l.b16 %v155
    %v362 = vunpack.c.l.b16 %v156
    %v363 = vunpack.c.l.b16 %v157
    %v364 = vunpack.c.l.b16 %v158
    %v365 = vunpack.c.l.b16 %v159
    %v366 = vunpack.c.l.b16 %v160
    %v367 = vunpack.c.l.b16 %v161
    %v368 = vunpack.c.l.b16 %v162
    %v369 = vunpack.c.l.b16 %v163
    %v370 = vunpack.c.l.b16 %v164
    %v371 = vunpack.c.l.b16 %v165
    %v372 = vunpack.c.l.b16 %v166
    %v373 = vunpack.c.l.b16 %v167
    %v374 = vunpack.c.l.b16 %v168
    %v375 = vunpack.c.l.b16 %v169
    %v376 = vunpack.c.l.b16 %v170
    %v377 = vunpack.c.l.b16 %v171
    %v378 = vunpack.c.l.b16 %v172
    %v379 = vunpack.c.l.b16 %v173
    %v380 = vunpack.c.l.b16 %v174
    %v381 = vunpack.c.l.b16 %v175
    %v382 = vunpack.c.l.b16 %v176
    %v383 = vunpack.c.l.b16 %v177
    %v384 = vunpack.c.l.b16 %v178
    %v385 = vunpack.c.l.b16 %v179
    %v386 = vunpack.c.l.b16 %v180
    %v387 = vunpack.c.l.b16 %v181
    %v388 = vunpack.c.l.b16 %v182
    %v389 = vunpack.c.l.b16 %v183
    %v390 = vunpack.c.l.b16 %v184
    %v391 = vunpack.c.l.b16 %v185
    %v392 = vunpack.c.l.b16 %v186
    %v393 = vpack.c.b16 %v298, %v297
    %v394 = vpack.c.b16 %v300, %v299
    %v395 = vpack.c.b16 %v302, %v301
    %v396 = vpack.c.b16 %v304, %v303
    %v397 = vpack.c.b16 %v306, %v305
    %v398 = vpack.c.b16 %v308, %v307
    %v399 = vpack.c.b16 %v310, %v309
    %v400 = vpack.c.b16 %v312, %v311
    %v401 = vpack.c.b16 %v314, %v313
    %v402 = vpack.c.b16 %v316, %v315
    %v403 = vpack.c.b16 %v318, %v317
    %v404 = vpack.c.b16 %v320, %v319
    %v405 = vpack.c.b16 %v322, %v321
    %v406 = vpack.c.b16 %v324, %v323
    %v407 = vpack.c.b16 %v326, %v325
    %v408 = vpack.c.b16 %v328, %v327
    %v409 = vpack.c.b16 %v330, %v329
    %v410 = vpack.c.b16 %v332, %v331
    %v411 = vpack.c.b16 %v334, %v333
    %v412 = vpack.c.b16 %v336, %v335
    %v413 = vpack.c.b16 %v338, %v337
    %v414 = vpack.c.b16 %v340, %v339
    %v415 = vpack.c.b16 %v342, %v341
    %v416 = vpack.c.b16 %v344, %v343
    %v417 = vpack.c.b16 %v346, %v345
    %v418 = vpack.c.b16 %v348, %v347
    %v419 = vpack.c.b16 %v350, %v349
    %v420 = vpack.c.b16 %v352, %v351
    %v421 = vpack.c.b16 %v354, %v353
    %v422 = vpack.c.b16 %v356, %v355
    %v423 = vpack.c.b16 %v358, %v357
    %v424 = vpack.c.b16 %v360, %v359
    %v425 = vpack.c.b16 %v362, %v361
    %v426 = vpack.c.b16 %v364, %v363
    %v427 = vpack.c.b16 %v366, %v365
    %v428 = vpack.c.b16 %v368, %v367
    %v429 = vpack.c.b16 %v370, %v369
    %v430 = vpack.c.b16 %v372, %v371
    %v431 = vpack.c.b16 %v374, %v373
    %v432 = vpack.c.b16 %v376, %v375
    %v433 = vpack.c.b16 %v378, %v377
    %v434 = vpack.c.b16 %v380, %v379
    %v435 = vpack.c.b16 %v382, %v381
    %v436 = vpack.c.b16 %v384, %v383
    %v437 = vpack.c.b16 %v386, %v385
    %v438 = vpack.c.b16 %v388, %v387
    %v439 = vpack.c.b16 %v390, %v389
    %v440 = vpack.c.b16 %v392, %v391
    %489 = vmatpush.bf16.msra.mxu0 %v400
    %490 = vmatpush.bf16.msra.mxu0 %v399
    %491 = vmatpush.bf16.msra.mxu0 %v398
    %492 = vmatpush.bf16.msra.mxu0 %v397
    %493 = vmatpush.bf16.msra.mxu0 %v396
    %494 = vmatpush.bf16.msra.mxu0 %v395
    %495 = vmatpush.bf16.msra.mxu0 %v394
    %496 = vmatpush.bf16.msra.mxu0 %v393
    %497 = vmatmul.bf16.gmra.mxu0 %v189
    %v498 = vpop.f32.mrf.mxu0
    %v499 = vadd.f32 %v84, %v498
    %v500 = vpop.f32.mrf.mxu0
    %501 = vdwg.mxu0
    %502 = vmatpush.bf16.msra.mxu0 %v408
    %503 = vmatpush.bf16.msra.mxu0 %v407
    %504 = vmatpush.bf16.msra.mxu0 %v406
    %505 = vmatpush.bf16.msra.mxu0 %v405
    %506 = vmatpush.bf16.msra.mxu0 %v404
    %507 = vmatpush.bf16.msra.mxu0 %v403
    %508 = vmatpush.bf16.msra.mxu0 %v402
    %509 = vmatpush.bf16.msra.mxu0 %v401
    %510 = vmatmul.bf16.gmra.mxu0 %v190
    %v511 = vpop.f32.mrf.mxu0
    %v512 = vadd.f32 %v499, %v511
    %v513 = vpop.f32.mrf.mxu0
    %514 = vdwg.mxu0
    %515 = vmatpush.bf16.msra.mxu0 %v416
    %516 = vmatpush.bf16.msra.mxu0 %v415
    %517 = vmatpush.bf16.msra.mxu0 %v414
    %518 = vmatpush.bf16.msra.mxu0 %v413
    %519 = vmatpush.bf16.msra.mxu0 %v412
    %520 = vmatpush.bf16.msra.mxu0 %v411
    %521 = vmatpush.bf16.msra.mxu0 %v410
    %522 = vmatpush.bf16.msra.mxu0 %v409
    %523 = vmatmul.bf16.gmra.mxu0 %v191
    %v524 = vpop.f32.mrf.mxu0
    %v525 = vadd.f32 %v512, %v524
    %v526 = vpop.f32.mrf.mxu0
    %527 = vdwg.mxu0
    %528 = vmatpush.bf16.msra.mxu0 %v424
    %529 = vmatpush.bf16.msra.mxu0 %v423
    %530 = vmatpush.bf16.msra.mxu0 %v422
    %531 = vmatpush.bf16.msra.mxu0 %v421
    %532 = vmatpush.bf16.msra.mxu0 %v420
    %533 = vmatpush.bf16.msra.mxu0 %v419
    %534 = vmatpush.bf16.msra.mxu0 %v418
    %535 = vmatpush.bf16.msra.mxu0 %v417
    %536 = vmatmul.bf16.gmra.mxu0 %v192
    %v537 = vpop.f32.mrf.mxu0
    %v538 = vadd.f32 %v525, %v537
    %v539 = vpop.f32.mrf.mxu0
    %540 = vdwg.mxu0
    %541 = vmatpush.bf16.msra.mxu0 %v432
    %542 = vmatpush.bf16.msra.mxu0 %v431
    %543 = vmatpush.bf16.msra.mxu0 %v430
    %544 = vmatpush.bf16.msra.mxu0 %v429
    %545 = vmatpush.bf16.msra.mxu0 %v428
    %546 = vmatpush.bf16.msra.mxu0 %v427
    %547 = vmatpush.bf16.msra.mxu0 %v426
    %548 = vmatpush.bf16.msra.mxu0 %v425
    %549 = vmatmul.bf16.gmra.mxu0 %v193
    %v550 = vpop.f32.mrf.mxu0
    %v551 = vadd.f32 %v538, %v550
    %v552 = vpop.f32.mrf.mxu0
    %553 = vdwg.mxu0
    %554 = vmatpush.bf16.msra.mxu0 %v440
    %555 = vmatpush.bf16.msra.mxu0 %v439
    %556 = vmatpush.bf16.msra.mxu0 %v438
    %557 = vmatpush.bf16.msra.mxu0 %v437
    %558 = vmatpush.bf16.msra.mxu0 %v436
    %559 = vmatpush.bf16.msra.mxu0 %v435
    %560 = vmatpush.bf16.msra.mxu0 %v434
    %561 = vmatpush.bf16.msra.mxu0 %v433
    %562 = vmatmul.bf16.gmra.mxu0 %v194
    %v563 = vpop.f32.mrf.mxu0
    %v564 = vadd.f32 %v551, %v563
    %v565 = vpop.f32.mrf.mxu0
    %566 = vdwg.mxu0
    %v567 = vld [vmem:[%s2] sm:$0x7]
    %v568 = vld [vmem:[%s3] sm:$0xff]
    %v569 = vld [vmem:[%s3 + $0x8] sm:$0xf]
    %v570 = vld [vmem:[%s3 + $0xc] sm:$0xff]
    %v571 = vld [vmem:[%s3 + $0x14] sm:$0xf]
    %v572 = vld [vmem:[%s3 + $0x18] sm:$0xff]
    %v573 = vld [vmem:[%s3 + $0x20] sm:$0xf]
    %v574 = vld [vmem:[%s3 + $0x24] sm:$0xff]
    %v575 = vld [vmem:[%s3 + $0x2c] sm:$0xf]
    %v576 = vld [vmem:[%s3 + $0x30] sm:$0xff]
    %v577 = vld [vmem:[%s3 + $0x38] sm:$0xf]
    %v578 = vld [vmem:[%s3 + $0x3c] sm:$0xff]
    %v579 = vld [vmem:[%s3 + $0x44] sm:$0xf]
    %v580 = vld [vmem:[%s3 + $0x48] sm:$0xff]
    %v581 = vld [vmem:[%s3 + $0x50] sm:$0xf]
    %v582 = vld [vmem:[%s3 + $0x54] sm:$0xff]
    %v583 = vld [vmem:[%s3 + $0x5c] sm:$0xf]
    %v584 = vld [vmem:[%s3 + $0x60] sm:$0xff]
    %v585 = vld [vmem:[%s3 + $0x68] sm:$0xf]
    %v586 = vld [vmem:[%s3 + $0x6c] sm:$0xff]
    %v587 = vld [vmem:[%s3 + $0x74] sm:$0xf]
    %v588 = vld [vmem:[%s3 + $0x78] sm:$0xff]
    %v589 = vld [vmem:[%s3 + $0x80] sm:$0xf]
    %v590 = vld [vmem:[%s3 + $0x84] sm:$0xff]
    %v591 = vld [vmem:[%s3 + $0x8c] sm:$0xf]
    %v592 = vld [vmem:[%s3 + $0x90] sm:$0xff]
    %v593 = vld [vmem:[%s3 + $0x98] sm:$0xf]
    %v594 = vld [vmem:[%s3 + $0x9c] sm:$0xff]
    %v595 = vld [vmem:[%s3 + $0xa4] sm:$0xf]
    %v596 = vld [vmem:[%s3 + $0xa8] sm:$0xff]
    %v597 = vld [vmem:[%s3 + $0xb0] sm:$0xf]
    %v598 = vld [vmem:[%s3 + $0xb4] sm:$0xff]
    %v599 = vld [vmem:[%s3 + $0xbc] sm:$0xf]
    %v601 = vperm.slane %v86, 0
    %v602 = vperm.slane %v86, 1
    %v603 = vperm.slane %v86, 2
    %v639 = vunpack.c.l.b16 %v568
    %v640 = vunpack.c.h.b16 %v568
    %v641 = vunpack.c.l.b16 %v569
    %v642 = vunpack.c.l.b16 %v570
    %v643 = vunpack.c.h.b16 %v570
    %v644 = vunpack.c.l.b16 %v571
    %v645 = vunpack.c.l.b16 %v572
    %v646 = vunpack.c.h.b16 %v572
    %v647 = vunpack.c.l.b16 %v573
    %v648 = vunpack.c.l.b16 %v574
    %v649 = vunpack.c.h.b16 %v574
    %v650 = vunpack.c.l.b16 %v575
    %v651 = vunpack.c.l.b16 %v576
    %v652 = vunpack.c.h.b16 %v576
    %v653 = vunpack.c.l.b16 %v577
    %v654 = vunpack.c.l.b16 %v578
    %v655 = vunpack.c.h.b16 %v578
    %v656 = vunpack.c.l.b16 %v579
    %v657 = vunpack.c.l.b16 %v580
    %v658 = vunpack.c.h.b16 %v580
    %v659 = vunpack.c.l.b16 %v581
    %v660 = vunpack.c.l.b16 %v582
    %v661 = vunpack.c.h.b16 %v582
    %v662 = vunpack.c.l.b16 %v583
    %v663 = vunpack.c.l.b16 %v584
    %v664 = vunpack.c.h.b16 %v584
    %v665 = vunpack.c.l.b16 %v585
    %v666 = vunpack.c.l.b16 %v586
    %v667 = vunpack.c.h.b16 %v586
    %v668 = vunpack.c.l.b16 %v587
    %v669 = vunpack.c.l.b16 %v588
    %v670 = vunpack.c.h.b16 %v588
    %v671 = vunpack.c.l.b16 %v589
    %v672 = vunpack.c.l.b16 %v590
    %v673 = vunpack.c.h.b16 %v590
    %v674 = vunpack.c.l.b16 %v591
    %v675 = vunpack.c.l.b16 %v592
    %v676 = vunpack.c.h.b16 %v592
    %v677 = vunpack.c.l.b16 %v593
    %v678 = vunpack.c.l.b16 %v594
    %v679 = vunpack.c.h.b16 %v594
    %v680 = vunpack.c.l.b16 %v595
    %v681 = vunpack.c.l.b16 %v596
    %v682 = vunpack.c.h.b16 %v596
    %v683 = vunpack.c.l.b16 %v597
    %v684 = vunpack.c.l.b16 %v598
    %v685 = vunpack.c.h.b16 %v598
    %v686 = vunpack.c.l.b16 %v599
    %v687 = vpack.c.b16 %v642, %v639
    %v688 = vpack.c.b16 %v643, %v640
    %v689 = vpack.c.b16 %v644, %v641
    %v690 = vpack.c.b16 %v648, %v645
    %v691 = vpack.c.b16 %v649, %v646
    %v692 = vpack.c.b16 %v650, %v647
    %v693 = vpack.c.b16 %v654, %v651
    %v694 = vpack.c.b16 %v655, %v652
    %v695 = vpack.c.b16 %v656, %v653
    %v696 = vpack.c.b16 %v660, %v657
    %v697 = vpack.c.b16 %v661, %v658
    %v698 = vpack.c.b16 %v662, %v659
    %v699 = vpack.c.b16 %v666, %v663
    %v700 = vpack.c.b16 %v667, %v664
    %v701 = vpack.c.b16 %v668, %v665
    %v702 = vpack.c.b16 %v672, %v669
    %v703 = vpack.c.b16 %v673, %v670
    %v704 = vpack.c.b16 %v674, %v671
    %v705 = vpack.c.b16 %v678, %v675
    %v706 = vpack.c.b16 %v679, %v676
    %v707 = vpack.c.b16 %v680, %v677
    %v708 = vpack.c.b16 %v684, %v681
    %v709 = vpack.c.b16 %v685, %v682
    %v710 = vpack.c.b16 %v686, %v683
    %735 = vmatpush.bf16.msra.mxu0 %v708
    %736 = vmatpush.bf16.msra.mxu0 %v705
    %737 = vmatpush.bf16.msra.mxu0 %v702
    %738 = vmatpush.bf16.msra.mxu0 %v699
    %739 = vmatpush.bf16.msra.mxu0 %v696
    %740 = vmatpush.bf16.msra.mxu0 %v693
    %741 = vmatpush.bf16.msra.mxu0 %v690
    %742 = vmatpush.bf16.msra.mxu0 %v687
    %743 = vmatmul.bf16.gmra.mxu0 %v567
    %v744 = vpop.f32.mrf.mxu0
    %v745 = vadd.f32 %v601, %v744
    %v746 = vpop.f32.mrf.mxu0
    %747 = vdwg.mxu0
    %748 = vmatpush.bf16.msra.mxu0 %v709
    %749 = vmatpush.bf16.msra.mxu0 %v706
    %750 = vmatpush.bf16.msra.mxu0 %v703
    %751 = vmatpush.bf16.msra.mxu0 %v700
    %752 = vmatpush.bf16.msra.mxu0 %v697
    %753 = vmatpush.bf16.msra.mxu0 %v694
    %754 = vmatpush.bf16.msra.mxu0 %v691
    %755 = vmatpush.bf16.msra.mxu0 %v688
    %756 = vmatmul.bf16.gmra.mxu0 %v567
    %v757 = vpop.f32.mrf.mxu0
    %v758 = vadd.f32 %v602, %v757
    %v759 = vpop.f32.mrf.mxu0
    %760 = vdwg.mxu0
    %761 = vmatpush.bf16.msra.mxu0 %v710
    %762 = vmatpush.bf16.msra.mxu0 %v707
    %763 = vmatpush.bf16.msra.mxu0 %v704
    %764 = vmatpush.bf16.msra.mxu0 %v701
    %765 = vmatpush.bf16.msra.mxu0 %v698
    %766 = vmatpush.bf16.msra.mxu0 %v695
    %767 = vmatpush.bf16.msra.mxu0 %v692
    %768 = vmatpush.bf16.msra.mxu0 %v689
    %769 = vmatmul.bf16.gmra.mxu0 %v567
    %v770 = vpop.f32.mrf.mxu0
    %v771 = vadd.f32 %v603, %v770
    %v772 = vpop.f32.mrf.mxu0
    %773 = vdwg.mxu0
    %v774 = vmax.f32 %v745, 0.0
    %v775 = vmax.f32 %v758, 0.0
    %v776 = vmax.f32 %v771, 0.0
    %v777 = vpack.c.bf16 %v774, %v774
    %v778 = vpack.c.bf16 %v775, %v775
    %v779 = vpack.c.bf16 %v776, %v776
    %v780 = vld [vmem:[#allocation6] sm:$0xff]
    %v781 = vld [vmem:[#allocation6 + $0x8] sm:$0xf]
    %v782 = vld [vmem:[#allocation6 + $0xc] sm:$0xff]
    %v783 = vld [vmem:[#allocation6 + $0x14] sm:$0xf]
    %v784 = vld [vmem:[#allocation6 + $0x18] sm:$0xff]
    %v785 = vld [vmem:[#allocation6 + $0x20] sm:$0xf]
    %v786 = vld [vmem:[#allocation6 + $0x24] sm:$0xff]
    %v787 = vld [vmem:[#allocation6 + $0x2c] sm:$0xf]
    %v788 = vld [vmem:[#allocation6 + $0x30] sm:$0xff]
    %v789 = vld [vmem:[#allocation6 + $0x38] sm:$0xf]
    %v790 = vld [vmem:[#allocation6 + $0x3c] sm:$0xff]
    %v791 = vld [vmem:[#allocation6 + $0x44] sm:$0xf]
    %v792 = vld [vmem:[#allocation6 + $0x48] sm:$0xff]
    %v793 = vld [vmem:[#allocation6 + $0x50] sm:$0xf]
    %v794 = vld [vmem:[#allocation6 + $0x54] sm:$0xff]
    %v795 = vld [vmem:[#allocation6 + $0x5c] sm:$0xf]
    %v796 = vld [vmem:[#allocation6 + $0x60] sm:$0xff]
    %v797 = vld [vmem:[#allocation6 + $0x68] sm:$0xf]
    %v798 = vld [vmem:[#allocation6 + $0x6c] sm:$0xff]
    %v799 = vld [vmem:[#allocation6 + $0x74] sm:$0xf]
    %v800 = vld [vmem:[#allocation6 + $0x78] sm:$0xff]
    %v801 = vld [vmem:[#allocation6 + $0x80] sm:$0xf]
    %v802 = vld [vmem:[#allocation6 + $0x84] sm:$0xff]
    %v803 = vld [vmem:[#allocation6 + $0x8c] sm:$0xf]
    %v804 = vld [vmem:[#allocation6 + $0x90] sm:$0xff]
    %v805 = vld [vmem:[#allocation6 + $0x98] sm:$0xf]
    %v806 = vld [vmem:[#allocation6 + $0x9c] sm:$0xff]
    %v807 = vld [vmem:[#allocation6 + $0xa4] sm:$0xf]
    %v808 = vld [vmem:[#allocation6 + $0xa8] sm:$0xff]
    %v809 = vld [vmem:[#allocation6 + $0xb0] sm:$0xf]
    %v810 = vld [vmem:[#allocation6 + $0xb4] sm:$0xff]
    %v811 = vld [vmem:[#allocation6 + $0xbc] sm:$0xf]
    %v812 = vld [vmem:[#allocation6 + $0xc0] sm:$0xff]
    %v813 = vld [vmem:[#allocation6 + $0xc8] sm:$0xf]
    %v814 = vld [vmem:[#allocation6 + $0xcc] sm:$0xff]
    %v815 = vld [vmem:[#allocation6 + $0xd4] sm:$0xf]
    %v816 = vld [vmem:[#allocation6 + $0xd8] sm:$0xff]
    %v817 = vld [vmem:[#allocation6 + $0xe0] sm:$0xf]
    %v818 = vld [vmem:[#allocation6 + $0xe4] sm:$0xff]
    %v819 = vld [vmem:[#allocation6 + $0xec] sm:$0xf]
    %v820 = vld [vmem:[#allocation6 + $0xf0] sm:$0xff]
    %v821 = vld [vmem:[#allocation6 + $0xf8] sm:$0xf]
    %v822 = vld [vmem:[#allocation6 + $0xfc] sm:$0xff]
    %v823 = vld [vmem:[#allocation6 + $0x104] sm:$0xf]
    %v824 = vld [vmem:[#allocation6 + $0x108] sm:$0xff]
    %v825 = vld [vmem:[#allocation6 + $0x110] sm:$0xf]
    %v826 = vld [vmem:[#allocation6 + $0x114] sm:$0xff]
    %v827 = vld [vmem:[#allocation6 + $0x11c] sm:$0xf]
    %v828 = vld [vmem:[#allocation6 + $0x120] sm:$0xff]
    %v829 = vld [vmem:[#allocation6 + $0x128] sm:$0xf]
    %v830 = vld [vmem:[#allocation6 + $0x12c] sm:$0xff]
    %v831 = vld [vmem:[#allocation6 + $0x134] sm:$0xf]
    %v832 = vld [vmem:[#allocation6 + $0x138] sm:$0xff]
    %v833 = vld [vmem:[#allocation6 + $0x140] sm:$0xf]
    %v834 = vld [vmem:[#allocation6 + $0x144] sm:$0xff]
    %v835 = vld [vmem:[#allocation6 + $0x14c] sm:$0xf]
    %v836 = vld [vmem:[#allocation6 + $0x150] sm:$0xff]
    %v837 = vld [vmem:[#allocation6 + $0x158] sm:$0xf]
    %v838 = vld [vmem:[#allocation6 + $0x15c] sm:$0xff]
    %v839 = vld [vmem:[#allocation6 + $0x164] sm:$0xf]
    %v840 = vld [vmem:[#allocation6 + $0x168] sm:$0xff]
    %v841 = vld [vmem:[#allocation6 + $0x170] sm:$0xf]
    %v842 = vld [vmem:[#allocation6 + $0x174] sm:$0xff]
    %v843 = vld [vmem:[#allocation6 + $0x17c] sm:$0xf]
    %v844 = vld [vmem:[#allocation6 + $0x180] sm:$0xff]
    %v845 = vld [vmem:[#allocation6 + $0x188] sm:$0xf]
    %v846 = vld [vmem:[#allocation6 + $0x18c] sm:$0xff]
    %v847 = vld [vmem:[#allocation6 + $0x194] sm:$0xf]
    %v848 = vld [vmem:[#allocation6 + $0x198] sm:$0xff]
    %v849 = vld [vmem:[#allocation6 + $0x1a0] sm:$0xf]
    %v850 = vld [vmem:[#allocation6 + $0x1a4] sm:$0xff]
    %v851 = vld [vmem:[#allocation6 + $0x1ac] sm:$0xf]
    %v852 = vld [vmem:[#allocation6 + $0x1b0] sm:$0xff]
    %v853 = vld [vmem:[#allocation6 + $0x1b8] sm:$0xf]
    %v854 = vld [vmem:[#allocation6 + $0x1bc] sm:$0xff]
    %v855 = vld [vmem:[#allocation6 + $0x1c4] sm:$0xf]
    %v856 = vld [vmem:[#allocation6 + $0x1c8] sm:$0xff]
    %v857 = vld [vmem:[#allocation6 + $0x1d0] sm:$0xf]
    %v858 = vld [vmem:[#allocation6 + $0x1d4] sm:$0xff]
    %v859 = vld [vmem:[#allocation6 + $0x1dc] sm:$0xf]
    %v860 = vld [vmem:[#allocation6 + $0x1e0] sm:$0xff]
    %v861 = vld [vmem:[#allocation6 + $0x1e8] sm:$0xf]
    %v862 = vld [vmem:[#allocation6 + $0x1ec] sm:$0xff]
    %v863 = vld [vmem:[#allocation6 + $0x1f4] sm:$0xf]
    %v864 = vld [vmem:[#allocation6 + $0x1f8] sm:$0xff]
    %v865 = vld [vmem:[#allocation6 + $0x200] sm:$0xf]
    %v866 = vld [vmem:[#allocation6 + $0x204] sm:$0xff]
    %v867 = vld [vmem:[#allocation6 + $0x20c] sm:$0xf]
    %v868 = vld [vmem:[#allocation6 + $0x210] sm:$0xff]
    %v869 = vld [vmem:[#allocation6 + $0x218] sm:$0xf]
    %v870 = vld [vmem:[#allocation6 + $0x21c] sm:$0xff]
    %v871 = vld [vmem:[#allocation6 + $0x224] sm:$0xf]
    %v872 = vld [vmem:[#allocation6 + $0x228] sm:$0xff]
    %v873 = vld [vmem:[#allocation6 + $0x230] sm:$0xf]
    %v874 = vld [vmem:[#allocation6 + $0x234] sm:$0xff]
    %v875 = vld [vmem:[#allocation6 + $0x23c] sm:$0xf]
    %v877 = vperm.slane %v88, 0
    %v878 = vperm.slane %v88, 1
    %v879 = vperm.slane %v88, 2
    %v979 = vunpack.c.l.b16 %v780
    %v980 = vunpack.c.h.b16 %v780
    %v981 = vunpack.c.l.b16 %v781
    %v982 = vunpack.c.l.b16 %v782
    %v983 = vunpack.c.h.b16 %v782
    %v984 = vunpack.c.l.b16 %v783
    %v985 = vunpack.c.l.b16 %v784
    %v986 = vunpack.c.h.b16 %v784
    %v987 = vunpack.c.l.b16 %v785
    %v988 = vunpack.c.l.b16 %v786
    %v989 = vunpack.c.h.b16 %v786
    %v990 = vunpack.c.l.b16 %v787
    %v991 = vunpack.c.l.b16 %v788
    %v992 = vunpack.c.h.b16 %v788
    %v993 = vunpack.c.l.b16 %v789
    %v994 = vunpack.c.l.b16 %v790
    %v995 = vunpack.c.h.b16 %v790
    %v996 = vunpack.c.l.b16 %v791
    %v997 = vunpack.c.l.b16 %v792
    %v998 = vunpack.c.h.b16 %v792
    %v999 = vunpack.c.l.b16 %v793
    %v1000 = vunpack.c.l.b16 %v794
    %v1001 = vunpack.c.h.b16 %v794
    %v1002 = vunpack.c.l.b16 %v795
    %v1003 = vunpack.c.l.b16 %v796
    %v1004 = vunpack.c.h.b16 %v796
    %v1005 = vunpack.c.l.b16 %v797
    %v1006 = vunpack.c.l.b16 %v798
    %v1007 = vunpack.c.h.b16 %v798
    %v1008 = vunpack.c.l.b16 %v799
    %v1009 = vunpack.c.l.b16 %v800
    %v1010 = vunpack.c.h.b16 %v800
    %v1011 = vunpack.c.l.b16 %v801
    %v1012 = vunpack.c.l.b16 %v802
    %v1013 = vunpack.c.h.b16 %v802
    %v1014 = vunpack.c.l.b16 %v803
    %v1015 = vunpack.c.l.b16 %v804
    %v1016 = vunpack.c.h.b16 %v804
    %v1017 = vunpack.c.l.b16 %v805
    %v1018 = vunpack.c.l.b16 %v806
    %v1019 = vunpack.c.h.b16 %v806
    %v1020 = vunpack.c.l.b16 %v807
    %v1021 = vunpack.c.l.b16 %v808
    %v1022 = vunpack.c.h.b16 %v808
    %v1023 = vunpack.c.l.b16 %v809
    %v1024 = vunpack.c.l.b16 %v810
    %v1025 = vunpack.c.h.b16 %v810
    %v1026 = vunpack.c.l.b16 %v811
    %v1027 = vunpack.c.l.b16 %v812
    %v1028 = vunpack.c.h.b16 %v812
    %v1029 = vunpack.c.l.b16 %v813
    %v1030 = vunpack.c.l.b16 %v814
    %v1031 = vunpack.c.h.b16 %v814
    %v1032 = vunpack.c.l.b16 %v815
    %v1033 = vunpack.c.l.b16 %v816
    %v1034 = vunpack.c.h.b16 %v816
    %v1035 = vunpack.c.l.b16 %v817
    %v1036 = vunpack.c.l.b16 %v818
    %v1037 = vunpack.c.h.b16 %v818
    %v1038 = vunpack.c.l.b16 %v819
    %v1039 = vunpack.c.l.b16 %v820
    %v1040 = vunpack.c.h.b16 %v820
    %v1041 = vunpack.c.l.b16 %v821
    %v1042 = vunpack.c.l.b16 %v822
    %v1043 = vunpack.c.h.b16 %v822
    %v1044 = vunpack.c.l.b16 %v823
    %v1045 = vunpack.c.l.b16 %v824
    %v1046 = vunpack.c.h.b16 %v824
    %v1047 = vunpack.c.l.b16 %v825
    %v1048 = vunpack.c.l.b16 %v826
    %v1049 = vunpack.c.h.b16 %v826
    %v1050 = vunpack.c.l.b16 %v827
    %v1051 = vunpack.c.l.b16 %v828
    %v1052 = vunpack.c.h.b16 %v828
    %v1053 = vunpack.c.l.b16 %v829
    %v1054 = vunpack.c.l.b16 %v830
    %v1055 = vunpack.c.h.b16 %v830
    %v1056 = vunpack.c.l.b16 %v831
    %v1057 = vunpack.c.l.b16 %v832
    %v1058 = vunpack.c.h.b16 %v832
    %v1059 = vunpack.c.l.b16 %v833
    %v1060 = vunpack.c.l.b16 %v834
    %v1061 = vunpack.c.h.b16 %v834
    %v1062 = vunpack.c.l.b16 %v835
    %v1063 = vunpack.c.l.b16 %v836
    %v1064 = vunpack.c.h.b16 %v836
    %v1065 = vunpack.c.l.b16 %v837
    %v1066 = vunpack.c.l.b16 %v838
    %v1067 = vunpack.c.h.b16 %v838
    %v1068 = vunpack.c.l.b16 %v839
    %v1069 = vunpack.c.l.b16 %v840
    %v1070 = vunpack.c.h.b16 %v840
    %v1071 = vunpack.c.l.b16 %v841
    %v1072 = vunpack.c.l.b16 %v842
    %v1073 = vunpack.c.h.b16 %v842
    %v1074 = vunpack.c.l.b16 %v843
    %v1075 = vunpack.c.l.b16 %v844
    %v1076 = vunpack.c.h.b16 %v844
    %v1077 = vunpack.c.l.b16 %v845
    %v1078 = vunpack.c.l.b16 %v846
    %v1079 = vunpack.c.h.b16 %v846
    %v1080 = vunpack.c.l.b16 %v847
    %v1081 = vunpack.c.l.b16 %v848
    %v1082 = vunpack.c.h.b16 %v848
    %v1083 = vunpack.c.l.b16 %v849
    %v1084 = vunpack.c.l.b16 %v850
    %v1085 = vunpack.c.h.b16 %v850
    %v1086 = vunpack.c.l.b16 %v851
    %v1087 = vunpack.c.l.b16 %v852
    %v1088 = vunpack.c.h.b16 %v852
    %v1089 = vunpack.c.l.b16 %v853
    %v1090 = vunpack.c.l.b16 %v854
    %v1091 = vunpack.c.h.b16 %v854
    %v1092 = vunpack.c.l.b16 %v855
    %v1093 = vunpack.c.l.b16 %v856
    %v1094 = vunpack.c.h.b16 %v856
    %v1095 = vunpack.c.l.b16 %v857
    %v1096 = vunpack.c.l.b16 %v858
    %v1097 = vunpack.c.h.b16 %v858
    %v1098 = vunpack.c.l.b16 %v859
    %v1099 = vunpack.c.l.b16 %v860
    %v1100 = vunpack.c.h.b16 %v860
    %v1101 = vunpack.c.l.b16 %v861
    %v1102 = vunpack.c.l.b16 %v862
    %v1103 = vunpack.c.h.b16 %v862
    %v1104 = vunpack.c.l.b16 %v863
    %v1105 = vunpack.c.l.b16 %v864
    %v1106 = vunpack.c.h.b16 %v864
    %v1107 = vunpack.c.l.b16 %v865
    %v1108 = vunpack.c.l.b16 %v866
    %v1109 = vunpack.c.h.b16 %v866
    %v1110 = vunpack.c.l.b16 %v867
    %v1111 = vunpack.c.l.b16 %v868
    %v1112 = vunpack.c.h.b16 %v868
    %v1113 = vunpack.c.l.b16 %v869
    %v1114 = vunpack.c.l.b16 %v870
    %v1115 = vunpack.c.h.b16 %v870
    %v1116 = vunpack.c.l.b16 %v871
    %v1117 = vunpack.c.l.b16 %v872
    %v1118 = vunpack.c.h.b16 %v872
    %v1119 = vunpack.c.l.b16 %v873
    %v1120 = vunpack.c.l.b16 %v874
    %v1121 = vunpack.c.h.b16 %v874
    %v1122 = vunpack.c.l.b16 %v875
    %v1123 = vpack.c.b16 %v982, %v979
    %v1124 = vpack.c.b16 %v983, %v980
    %v1125 = vpack.c.b16 %v984, %v981
    %v1126 = vpack.c.b16 %v988, %v985
    %v1127 = vpack.c.b16 %v989, %v986
    %v1128 = vpack.c.b16 %v990, %v987
    %v1129 = vpack.c.b16 %v994, %v991
    %v1130 = vpack.c.b16 %v995, %v992
    %v1131 = vpack.c.b16 %v996, %v993
    %v1132 = vpack.c.b16 %v1000, %v997
    %v1133 = vpack.c.b16 %v1001, %v998
    %v1134 = vpack.c.b16 %v1002, %v999
    %v1135 = vpack.c.b16 %v1006, %v1003
    %v1136 = vpack.c.b16 %v1007, %v1004
    %v1137 = vpack.c.b16 %v1008, %v1005
    %v1138 = vpack.c.b16 %v1012, %v1009
    %v1139 = vpack.c.b16 %v1013, %v1010
    %v1140 = vpack.c.b16 %v1014, %v1011
    %v1141 = vpack.c.b16 %v1018, %v1015
    %v1142 = vpack.c.b16 %v1019, %v1016
    %v1143 = vpack.c.b16 %v1020, %v1017
    %v1144 = vpack.c.b16 %v1024, %v1021
    %v1145 = vpack.c.b16 %v1025, %v1022
    %v1146 = vpack.c.b16 %v1026, %v1023
    %v1147 = vpack.c.b16 %v1030, %v1027
    %v1148 = vpack.c.b16 %v1031, %v1028
    %v1149 = vpack.c.b16 %v1032, %v1029
    %v1150 = vpack.c.b16 %v1036, %v1033
    %v1151 = vpack.c.b16 %v1037, %v1034
    %v1152 = vpack.c.b16 %v1038, %v1035
    %v1153 = vpack.c.b16 %v1042, %v1039
    %v1154 = vpack.c.b16 %v1043, %v1040
    %v1155 = vpack.c.b16 %v1044, %v1041
    %v1156 = vpack.c.b16 %v1048, %v1045
    %v1157 = vpack.c.b16 %v1049, %v1046
    %v1158 = vpack.c.b16 %v1050, %v1047
    %v1159 = vpack.c.b16 %v1054, %v1051
    %v1160 = vpack.c.b16 %v1055, %v1052
    %v1161 = vpack.c.b16 %v1056, %v1053
    %v1162 = vpack.c.b16 %v1060, %v1057
    %v1163 = vpack.c.b16 %v1061, %v1058
    %v1164 = vpack.c.b16 %v1062, %v1059
    %v1165 = vpack.c.b16 %v1066, %v1063
    %v1166 = vpack.c.b16 %v1067, %v1064
    %v1167 = vpack.c.b16 %v1068, %v1065
    %v1168 = vpack.c.b16 %v1072, %v1069
    %v1169 = vpack.c.b16 %v1073, %v1070
    %v1170 = vpack.c.b16 %v1074, %v1071
    %v1171 = vpack.c.b16 %v1078, %v1075
    %v1172 = vpack.c.b16 %v1079, %v1076
    %v1173 = vpack.c.b16 %v1080, %v1077
    %v1174 = vpack.c.b16 %v1084, %v1081
    %v1175 = vpack.c.b16 %v1085, %v1082
    %v1176 = vpack.c.b16 %v1086, %v1083
    %v1177 = vpack.c.b16 %v1090, %v1087
    %v1178 = vpack.c.b16 %v1091, %v1088
    %v1179 = vpack.c.b16 %v1092, %v1089
    %v1180 = vpack.c.b16 %v1096, %v1093
    %v1181 = vpack.c.b16 %v1097, %v1094
    %v1182 = vpack.c.b16 %v1098, %v1095
    %v1183 = vpack.c.b16 %v1102, %v1099
    %v1184 = vpack.c.b16 %v1103, %v1100
    %v1185 = vpack.c.b16 %v1104, %v1101
    %v1186 = vpack.c.b16 %v1108, %v1105
    %v1187 = vpack.c.b16 %v1109, %v1106
    %v1188 = vpack.c.b16 %v1110, %v1107
    %v1189 = vpack.c.b16 %v1114, %v1111
    %v1190 = vpack.c.b16 %v1115, %v1112
    %v1191 = vpack.c.b16 %v1116, %v1113
    %v1192 = vpack.c.b16 %v1120, %v1117
    %v1193 = vpack.c.b16 %v1121, %v1118
    %v1194 = vpack.c.b16 %v1122, %v1119
    %1267 = vmatpush.bf16.msra.mxu0 %v1144
    %1268 = vmatpush.bf16.msra.mxu0 %v1141
    %1269 = vmatpush.bf16.msra.mxu0 %v1138
    %1270 = vmatpush.bf16.msra.mxu0 %v1135
    %1271 = vmatpush.bf16.msra.mxu0 %v1132
    %1272 = vmatpush.bf16.msra.mxu0 %v1129
    %1273 = vmatpush.bf16.msra.mxu0 %v1126
    %1274 = vmatpush.bf16.msra.mxu0 %v1123
    %1275 = vmatmul.bf16.gmra.mxu0 %v777
    %v1276 = vpop.f32.mrf.mxu0
    %v1277 = vadd.f32 %v877, %v1276
    %v1278 = vpop.f32.mrf.mxu0
    %1279 = vdwg.mxu0
    %1280 = vmatpush.bf16.msra.mxu0 %v1168
    %1281 = vmatpush.bf16.msra.mxu0 %v1165
    %1282 = vmatpush.bf16.msra.mxu0 %v1162
    %1283 = vmatpush.bf16.msra.mxu0 %v1159
    %1284 = vmatpush.bf16.msra.mxu0 %v1156
    %1285 = vmatpush.bf16.msra.mxu0 %v1153
    %1286 = vmatpush.bf16.msra.mxu0 %v1150
    %1287 = vmatpush.bf16.msra.mxu0 %v1147
    %1288 = vmatmul.bf16.gmra.mxu0 %v778
    %v1289 = vpop.f32.mrf.mxu0
    %v1290 = vadd.f32 %v1277, %v1289
    %v1291 = vpop.f32.mrf.mxu0
    %1292 = vdwg.mxu0
    %1293 = vmatpush.bf16.msra.mxu0 %v1192
    %1294 = vmatpush.bf16.msra.mxu0 %v1189
    %1295 = vmatpush.bf16.msra.mxu0 %v1186
    %1296 = vmatpush.bf16.msra.mxu0 %v1183
    %1297 = vmatpush.bf16.msra.mxu0 %v1180
    %1298 = vmatpush.bf16.msra.mxu0 %v1177
    %1299 = vmatpush.bf16.msra.mxu0 %v1174
    %1300 = vmatpush.bf16.msra.mxu0 %v1171
    %1301 = vmatmul.bf16.gmra.mxu0 %v779
    %v1302 = vpop.f32.mrf.mxu0
    %v1303 = vadd.f32 %v1290, %v1302
    %v1304 = vpop.f32.mrf.mxu0
    %1305 = vdwg.mxu0
    %1306 = vmatpush.bf16.msra.mxu0 %v1145
    %1307 = vmatpush.bf16.msra.mxu0 %v1142
    %1308 = vmatpush.bf16.msra.mxu0 %v1139
    %1309 = vmatpush.bf16.msra.mxu0 %v1136
    %1310 = vmatpush.bf16.msra.mxu0 %v1133
    %1311 = vmatpush.bf16.msra.mxu0 %v1130
    %1312 = vmatpush.bf16.msra.mxu0 %v1127
    %1313 = vmatpush.bf16.msra.mxu0 %v1124
    %1314 = vmatmul.bf16.gmra.mxu0 %v777
    %v1315 = vpop.f32.mrf.mxu0
    %v1316 = vadd.f32 %v878, %v1315
    %v1317 = vpop.f32.mrf.mxu0
    %1318 = vdwg.mxu0
    %1319 = vmatpush.bf16.msra.mxu0 %v1169
    %1320 = vmatpush.bf16.msra.mxu0 %v1166
    %1321 = vmatpush.bf16.msra.mxu0 %v1163
    %1322 = vmatpush.bf16.msra.mxu0 %v1160
    %1323 = vmatpush.bf16.msra.mxu0 %v1157
    %1324 = vmatpush.bf16.msra.mxu0 %v1154
    %1325 = vmatpush.bf16.msra.mxu0 %v1151
    %1326 = vmatpush.bf16.msra.mxu0 %v1148
    %1327 = vmatmul.bf16.gmra.mxu0 %v778
    %v1328 = vpop.f32.mrf.mxu0
    %v1329 = vadd.f32 %v1316, %v1328
    %v1330 = vpop.f32.mrf.mxu0
    %1331 = vdwg.mxu0
    %1332 = vmatpush.bf16.msra.mxu0 %v1193
    %1333 = vmatpush.bf16.msra.mxu0 %v1190
    %1334 = vmatpush.bf16.msra.mxu0 %v1187
    %1335 = vmatpush.bf16.msra.mxu0 %v1184
    %1336 = vmatpush.bf16.msra.mxu0 %v1181
    %1337 = vmatpush.bf16.msra.mxu0 %v1178
    %1338 = vmatpush.bf16.msra.mxu0 %v1175
    %1339 = vmatpush.bf16.msra.mxu0 %v1172
    %1340 = vmatmul.bf16.gmra.mxu0 %v779
    %v1341 = vpop.f32.mrf.mxu0
    %v1342 = vadd.f32 %v1329, %v1341
    %v1343 = vpop.f32.mrf.mxu0
    %1344 = vdwg.mxu0
    %1345 = vmatpush.bf16.msra.mxu0 %v1146
    %1346 = vmatpush.bf16.msra.mxu0 %v1143
    %1347 = vmatpush.bf16.msra.mxu0 %v1140
    %1348 = vmatpush.bf16.msra.mxu0 %v1137
    %1349 = vmatpush.bf16.msra.mxu0 %v1134
    %1350 = vmatpush.bf16.msra.mxu0 %v1131
    %1351 = vmatpush.bf16.msra.mxu0 %v1128
    %1352 = vmatpush.bf16.msra.mxu0 %v1125
    %1353 = vmatmul.bf16.gmra.mxu0 %v777
    %v1354 = vpop.f32.mrf.mxu0
    %v1355 = vadd.f32 %v879, %v1354
    %v1356 = vpop.f32.mrf.mxu0
    %1357 = vdwg.mxu0
    %1358 = vmatpush.bf16.msra.mxu0 %v1170
    %1359 = vmatpush.bf16.msra.mxu0 %v1167
    %1360 = vmatpush.bf16.msra.mxu0 %v1164
    %1361 = vmatpush.bf16.msra.mxu0 %v1161
    %1362 = vmatpush.bf16.msra.mxu0 %v1158
    %1363 = vmatpush.bf16.msra.mxu0 %v1155
    %1364 = vmatpush.bf16.msra.mxu0 %v1152
    %1365 = vmatpush.bf16.msra.mxu0 %v1149
    %1366 = vmatmul.bf16.gmra.mxu0 %v778
    %v1367 = vpop.f32.mrf.mxu0
    %v1368 = vadd.f32 %v1355, %v1367
    %v1369 = vpop.f32.mrf.mxu0
    %1370 = vdwg.mxu0
    %1371 = vmatpush.bf16.msra.mxu0 %v1194
    %1372 = vmatpush.bf16.msra.mxu0 %v1191
    %1373 = vmatpush.bf16.msra.mxu0 %v1188
    %1374 = vmatpush.bf16.msra.mxu0 %v1185
    %1375 = vmatpush.bf16.msra.mxu0 %v1182
    %1376 = vmatpush.bf16.msra.mxu0 %v1179
    %1377 = vmatpush.bf16.msra.mxu0 %v1176
    %1378 = vmatpush.bf16.msra.mxu0 %v1173
    %1379 = vmatmul.bf16.gmra.mxu0 %v779
    %v1380 = vpop.f32.mrf.mxu0
    %v1381 = vadd.f32 %v1368, %v1380
    %v1382 = vpop.f32.mrf.mxu0
    %1383 = vdwg.mxu0
    %v1384 = vmax.f32 %v1303, 0.0
    %v1385 = vmax.f32 %v1342, 0.0
    %v1386 = vmax.f32 %v1381, 0.0
    %v1387 = vpack.c.bf16 %v1384, %v1384
    %v1388 = vpack.c.bf16 %v1385, %v1385
    %v1389 = vpack.c.bf16 %v1386, %v1386
    %v1390 = vld [vmem:[#allocation8] sm:$0xf]
    %v1391 = vld [vmem:[#allocation8 + $0x4] sm:$0xf]
    %v1392 = vld [vmem:[#allocation8 + $0x8] sm:$0xf]
    %v1393 = vld [vmem:[#allocation8 + $0xc] sm:$0xf]
    %v1394 = vld [vmem:[#allocation8 + $0x10] sm:$0xf]
    %v1395 = vld [vmem:[#allocation8 + $0x14] sm:$0xf]
    %v1396 = vld [vmem:[#allocation8 + $0x18] sm:$0xf]
    %v1397 = vld [vmem:[#allocation8 + $0x1c] sm:$0xf]
    %v1398 = vld [vmem:[#allocation8 + $0x20] sm:$0xf]
    %v1399 = vld [vmem:[#allocation8 + $0x24] sm:$0xf]
    %v1400 = vld [vmem:[#allocation8 + $0x28] sm:$0xf]
    %v1401 = vld [vmem:[#allocation8 + $0x2c] sm:$0xf]
    %v1402 = vld [vmem:[#allocation8 + $0x30] sm:$0xf]
    %v1403 = vld [vmem:[#allocation8 + $0x34] sm:$0xf]
    %v1404 = vld [vmem:[#allocation8 + $0x38] sm:$0xf]
    %v1405 = vld [vmem:[#allocation8 + $0x3c] sm:$0xf]
    %v1406 = vld [vmem:[#allocation8 + $0x40] sm:$0xf]
    %v1407 = vld [vmem:[#allocation8 + $0x44] sm:$0xf]
    %v1408 = vld [vmem:[#allocation8 + $0x48] sm:$0xf]
    %v1409 = vld [vmem:[#allocation8 + $0x4c] sm:$0xf]
    %v1410 = vld [vmem:[#allocation8 + $0x50] sm:$0xf]
    %v1411 = vld [vmem:[#allocation8 + $0x54] sm:$0xf]
    %v1412 = vld [vmem:[#allocation8 + $0x58] sm:$0xf]
    %v1413 = vld [vmem:[#allocation8 + $0x5c] sm:$0xf]
    %v1414 = vld [vmem:[#allocation8 + $0x60] sm:$0xf]
    %v1415 = vld [vmem:[#allocation8 + $0x64] sm:$0xf]
    %v1416 = vld [vmem:[#allocation8 + $0x68] sm:$0xf]
    %v1417 = vld [vmem:[#allocation8 + $0x6c] sm:$0xf]
    %v1418 = vld [vmem:[#allocation8 + $0x70] sm:$0xf]
    %v1419 = vld [vmem:[#allocation8 + $0x74] sm:$0xf]
    %v1420 = vld [vmem:[#allocation8 + $0x78] sm:$0xf]
    %v1421 = vld [vmem:[#allocation8 + $0x7c] sm:$0xf]
    %v1422 = vld [vmem:[#allocation8 + $0x80] sm:$0xf]
    %v1423 = vld [vmem:[#allocation8 + $0x84] sm:$0xf]
    %v1424 = vld [vmem:[#allocation8 + $0x88] sm:$0xf]
    %v1425 = vld [vmem:[#allocation8 + $0x8c] sm:$0xf]
    %v1426 = vld [vmem:[#allocation8 + $0x90] sm:$0xf]
    %v1427 = vld [vmem:[#allocation8 + $0x94] sm:$0xf]
    %v1428 = vld [vmem:[#allocation8 + $0x98] sm:$0xf]
    %v1429 = vld [vmem:[#allocation8 + $0x9c] sm:$0xf]
    %v1430 = vld [vmem:[#allocation8 + $0xa0] sm:$0xf]
    %v1431 = vld [vmem:[#allocation8 + $0xa4] sm:$0xf]
    %v1432 = vld [vmem:[#allocation8 + $0xa8] sm:$0xf]
    %v1433 = vld [vmem:[#allocation8 + $0xac] sm:$0xf]
    %v1434 = vld [vmem:[#allocation8 + $0xb0] sm:$0xf]
    %v1435 = vld [vmem:[#allocation8 + $0xb4] sm:$0xf]
    %v1436 = vld [vmem:[#allocation8 + $0xb8] sm:$0xf]
    %v1437 = vld [vmem:[#allocation8 + $0xbc] sm:$0xf]
    %v1486 = vunpack.c.l.b16 %v1390
    %v1487 = vunpack.c.l.b16 %v1391
    %v1488 = vunpack.c.l.b16 %v1392
    %v1489 = vunpack.c.l.b16 %v1393
    %v1490 = vunpack.c.l.b16 %v1394
    %v1491 = vunpack.c.l.b16 %v1395
    %v1492 = vunpack.c.l.b16 %v1396
    %v1493 = vunpack.c.l.b16 %v1397
    %v1494 = vunpack.c.l.b16 %v1398
    %v1495 = vunpack.c.l.b16 %v1399
    %v1496 = vunpack.c.l.b16 %v1400
    %v1497 = vunpack.c.l.b16 %v1401
    %v1498 = vunpack.c.l.b16 %v1402
    %v1499 = vunpack.c.l.b16 %v1403
    %v1500 = vunpack.c.l.b16 %v1404
    %v1501 = vunpack.c.l.b16 %v1405
    %v1502 = vunpack.c.l.b16 %v1406
    %v1503 = vunpack.c.l.b16 %v1407
    %v1504 = vunpack.c.l.b16 %v1408
    %v1505 = vunpack.c.l.b16 %v1409
    %v1506 = vunpack.c.l.b16 %v1410
    %v1507 = vunpack.c.l.b16 %v1411
    %v1508 = vunpack.c.l.b16 %v1412
    %v1509 = vunpack.c.l.b16 %v1413
    %v1510 = vunpack.c.l.b16 %v1414
    %v1511 = vunpack.c.l.b16 %v1415
    %v1512 = vunpack.c.l.b16 %v1416
    %v1513 = vunpack.c.l.b16 %v1417
    %v1514 = vunpack.c.l.b16 %v1418
    %v1515 = vunpack.c.l.b16 %v1419
    %v1516 = vunpack.c.l.b16 %v1420
    %v1517 = vunpack.c.l.b16 %v1421
    %v1518 = vunpack.c.l.b16 %v1422
    %v1519 = vunpack.c.l.b16 %v1423
    %v1520 = vunpack.c.l.b16 %v1424
    %v1521 = vunpack.c.l.b16 %v1425
    %v1522 = vunpack.c.l.b16 %v1426
    %v1523 = vunpack.c.l.b16 %v1427
    %v1524 = vunpack.c.l.b16 %v1428
    %v1525 = vunpack.c.l.b16 %v1429
    %v1526 = vunpack.c.l.b16 %v1430
    %v1527 = vunpack.c.l.b16 %v1431
    %v1528 = vunpack.c.l.b16 %v1432
    %v1529 = vunpack.c.l.b16 %v1433
    %v1530 = vunpack.c.l.b16 %v1434
    %v1531 = vunpack.c.l.b16 %v1435
    %v1532 = vunpack.c.l.b16 %v1436
    %v1533 = vunpack.c.l.b16 %v1437
    %v1534 = vpack.c.b16 %v1487, %v1486
    %v1535 = vpack.c.b16 %v1489, %v1488
    %v1536 = vpack.c.b16 %v1491, %v1490
    %v1537 = vpack.c.b16 %v1493, %v1492
    %v1538 = vpack.c.b16 %v1495, %v1494
    %v1539 = vpack.c.b16 %v1497, %v1496
    %v1540 = vpack.c.b16 %v1499, %v1498
    %v1541 = vpack.c.b16 %v1501, %v1500
    %v1542 = vpack.c.b16 %v1503, %v1502
    %v1543 = vpack.c.b16 %v1505, %v1504
    %v1544 = vpack.c.b16 %v1507, %v1506
    %v1545 = vpack.c.b16 %v1509, %v1508
    %v1546 = vpack.c.b16 %v1511, %v1510
    %v1547 = vpack.c.b16 %v1513, %v1512
    %v1548 = vpack.c.b16 %v1515, %v1514
    %v1549 = vpack.c.b16 %v1517, %v1516
    %v1550 = vpack.c.b16 %v1519, %v1518
    %v1551 = vpack.c.b16 %v1521, %v1520
    %v1552 = vpack.c.b16 %v1523, %v1522
    %v1553 = vpack.c.b16 %v1525, %v1524
    %v1554 = vpack.c.b16 %v1527, %v1526
    %v1555 = vpack.c.b16 %v1529, %v1528
    %v1556 = vpack.c.b16 %v1531, %v1530
    %v1557 = vpack.c.b16 %v1533, %v1532
    %1582 = vmatpush.bf16.msra.mxu0 %v1541
    %1583 = vmatpush.bf16.msra.mxu0 %v1540
    %1584 = vmatpush.bf16.msra.mxu0 %v1539
    %1585 = vmatpush.bf16.msra.mxu0 %v1538
    %1586 = vmatpush.bf16.msra.mxu0 %v1537
    %1587 = vmatpush.bf16.msra.mxu0 %v1536
    %1588 = vmatpush.bf16.msra.mxu0 %v1535
    %1589 = vmatpush.bf16.msra.mxu0 %v1534
    %1590 = vmatmul.bf16.gmra.mxu0 %v1387
    %v1591 = vpop.f32.mrf.mxu0
    %v1592 = vadd.f32 %v89, %v1591
    %v1593 = vpop.f32.mrf.mxu0
    %1594 = vdwg.mxu0
    %1595 = vmatpush.bf16.msra.mxu0 %v1549
    %1596 = vmatpush.bf16.msra.mxu0 %v1548
    %1597 = vmatpush.bf16.msra.mxu0 %v1547
    %1598 = vmatpush.bf16.msra.mxu0 %v1546
    %1599 = vmatpush.bf16.msra.mxu0 %v1545
    %1600 = vmatpush.bf16.msra.mxu0 %v1544
    %1601 = vmatpush.bf16.msra.mxu0 %v1543
    %1602 = vmatpush.bf16.msra.mxu0 %v1542
    %1603 = vmatmul.bf16.gmra.mxu0 %v1388
    %v1604 = vpop.f32.mrf.mxu0
    %v1605 = vadd.f32 %v1592, %v1604
    %v1606 = vpop.f32.mrf.mxu0
    %1607 = vdwg.mxu0
    %1608 = vmatpush.bf16.msra.mxu0 %v1557
    %1609 = vmatpush.bf16.msra.mxu0 %v1556
    %1610 = vmatpush.bf16.msra.mxu0 %v1555
    %1611 = vmatpush.bf16.msra.mxu0 %v1554
    %1612 = vmatpush.bf16.msra.mxu0 %v1553
    %1613 = vmatpush.bf16.msra.mxu0 %v1552
    %1614 = vmatpush.bf16.msra.mxu0 %v1551
    %1615 = vmatpush.bf16.msra.mxu0 %v1550
    %1616 = vmatmul.bf16.gmra.mxu0 %v1389
    %v1617 = vpop.f32.mrf.mxu0
    %v1618 = vadd.f32 %v1605, %v1617
    %v1619 = vpop.f32.mrf.mxu0
    %1620 = vdwg.mxu0
    %1621 = vst [vmem:[#allocation10] sm:$0x3f] %v1618
    %v1622 = vld [vmem:[%s7] sm:$0xff]
    %v1623 = vld [vmem:[%s7 + $0x8] sm:$0xff]
    %v1624 = vmul.f32 %v564, %v564
    %vm1625 = vcmask 1041408
    %v1626 = vsel %vm1625, %v1624, 0.0
    %1627 = vadd.xlane.f32.xlu0 %v1626
    %v1628 = vpop.xlane.xlu0 %1627
    %vm1629 = vcmp.gt.f32.partialorder %v1628, 0.0
    %v1630 = vrsqrt.pop %v1628
    %v1631 = vmul.f32 %v1630, %v1628
    %v1632 = vmul.f32 %v1631, %v1630
    %v1633 = vmul.f32 0.5, %v1632
    %v1634 = vsub.f32 1.5, %v1633
    %v1635 = vmul.f32 %v1630, %v1634
    %vm1636 = vweird.f32 %v1628
    %vm1637 = vweird.f32 %v1630
    %vm1638 = vmor %vm1636, %vm1637
    %v1639 = vsel %vm1638, %v1630, %v1635
    %v1640 = vsel %vm1629, %v1639, 0.0
    %v1641 = vmul.f32 %v564, %v1640
    %v1643 = vrot.slane %v1641, 1
    %v1644 = vperm.slane %v1641, 0
    %v1645 = vperm.slane %v1643, 0
    %v1648 = vmul.f32 %v1622, %v1644
    %v1649 = vmul.f32 %v1623, %v1645
    %1650 = vadd.xlane.f32.xlu0 %v1648
    %v1651 = vpop.xlane.xlu0 %1650
    %1652 = vadd.xlane.f32.xlu0 %v1649
    %v1653 = vpop.xlane.xlu0 %1652
    %v1654 = vmul.f32 %v1622, %v1622
    %v1655 = vmul.f32 %v1623, %v1623
    %1656 = vadd.xlane.f32.xlu0 %v1654
    %v1657 = vpop.xlane.xlu0 %1656
    %1658 = vadd.xlane.f32.xlu0 %v1655
    %v1659 = vpop.xlane.xlu0 %1658
    %vm1660 = vcmp.gt.f32.partialorder %v1657, 0.0
    %vm1661 = vcmp.gt.f32.partialorder %v1659, 0.0
    %v1662 = vrsqrt.pop %v1657
    %v1663 = vmul.f32 %v1662, %v1657
    %v1664 = vmul.f32 %v1663, %v1662
    %v1665 = vmul.f32 0.5, %v1664
    %v1666 = vsub.f32 1.5, %v1665
    %v1667 = vmul.f32 %v1662, %v1666
    %vm1668 = vweird.f32 %v1657
    %vm1669 = vweird.f32 %v1662
    %vm1670 = vmor %vm1668, %vm1669
    %v1671 = vsel %vm1670, %v1662, %v1667
    %v1672 = vrsqrt.pop %v1659
    %v1673 = vmul.f32 %v1672, %v1659
    %v1674 = vmul.f32 %v1673, %v1672
    %v1675 = vmul.f32 0.5, %v1674
    %v1676 = vsub.f32 1.5, %v1675
    %v1677 = vmul.f32 %v1672, %v1676
    %vm1678 = vweird.f32 %v1659
    %vm1679 = vweird.f32 %v1672
    %vm1680 = vmor %vm1678, %vm1679
    %v1681 = vsel %vm1680, %v1672, %v1677
    %v1682 = vsel %vm1660, %v1671, 0.0
    %v1683 = vsel %vm1661, %v1681, 0.0
    %v1684 = vmul.f32 %v1651, %v1682
    %v1685 = vmul.f32 %v1653, %v1683
    %s1686 = sld [smem:[#allocation2]]
    %v1687 = vstv %s1686
    %v1688 = vmul.f32 %v1684, %v1687
    %v1689 = vmul.f32 %v1685, %v1687
    %v1692 = vlaneseq
    %v1693 = vand.u32 %v1692, 127
    %v1694 = vperm.slane %v1688, %v1693
    %v1695 = vperm.slane %v1689, %v1693
    %vm1696 = vcmask 1041409
    %v1697 = vsel %vm1696, %v1695, %v1694
    %vm1699 = vcmask 58368
    %1700 = vst.msk [vmem:[#allocation9] sm:$0x3] %vm1699, %v1697
    // Predicated region
    $region50: #{compositional_clip_forward.1} parent=1 // pred_check
      _
    $region51: #{compositional_clip_forward.1} parent=1 // pred_check_branch
      %1702 = sbr.rel (0) target = $region53
    $region52: #{compositional_clip_forward.1} parent=1 // pred_region
      %1704 = vsyncadd [#allocation5], 0
      %s1706 = sshll.u32 [#allocation9], 4
      %s1707 = int_to_ptr.vmem [resolvable:$true] %s1706
      %s1708 = sshll.u32 %s9, 4
      %s1709 = int_to_ptr.hbm [resolvable:$true] %s1708
      %1711 = dma.vmem_to_hbm [thread:$0]  %s1707, 32, %s1709, [#allocation5]
    $region53: #{compositional_clip_forward.1} parent=1 // pred_fallthru
      _
    // Predicated region
    $region54: #{compositional_clip_forward.1} parent=1 // pred_check
      _
    $region55: #{compositional_clip_forward.1} parent=1 // pred_check_branch
      %1713 = sbr.rel (0) target = $region57
    $region56: #{compositional_clip_forward.1} parent=1 // pred_region
      %1715 = vsyncadd [#allocation11], 0
      %s1717 = sshll.u32 [#allocation10], 4
      %s1718 = int_to_ptr.vmem [resolvable:$true] %s1717
      %s1719 = sshll.u32 %s10, 4
      %s1720 = int_to_ptr.hbm [resolvable:$true] %s1719
      %1722 = dma.vmem_to_hbm [thread:$0]  %s1718, 128, %s1720, [#allocation11]
    $region57: #{compositional_clip_forward.1} parent=1 // pred_fallthru
      _
    // Predicated region
    $region58: #{compositional_clip_forward.1} parent=1 // pred_check
      _
    $region59: #{compositional_clip_forward.1} parent=1 // pred_check_branch
      %1724 = sbr.rel (0) target = $region61
    $region60: #{compositional_clip_forward.1} parent=1 // pred_region
      %1726 = dma.done [#allocation5], 32
    $region61: #{compositional_clip_forward.1} parent=1 // pred_fallthru
      _
    // Predicated region
    $region62: #{compositional_clip_forward.1} parent=1 // pred_check
      _
    $region63: #{compositional_clip_forward.1} parent=1 // pred_check_branch
      %1728 = sbr.rel (0) target = $region65
    $region64: #{compositional_clip_forward.1} parent=1 // pred_region
      %1730 = dma.done [#allocation11], 128
    $region65: #{compositional_clip_forward.1} parent=1 // pred_fallthru
      _
    %1731 = vsyncpa [#allocation4], 1
    %1732 = vsyncpa [#allocation7], 1
    %1733 = vsyncpa [#allocation5], 1
    %1734 = vsyncpa [#allocation11], 1

</llo_original>
